<compile_context>
chip_gen: v7x
topology: tpu7x:2x2x1
jax: 0.10.0
libtpu: 0.0.40
codegen_flags: <defaults>
</compile_context>

<pallas_src>
import numpy as np
import jax
import jax.numpy as jnp
from jax.experimental import pallas as pl
from jax.experimental.pallas import tpu as pltpu


def _round_up(n, m):
    return ((n + m - 1) // m) * m


# ------------------------------ Pallas kernel -------------------------------

def _encoder_kernel(x_ref, m1_ref, b1_ref, m2_ref, b2_ref, w3_ref, b3_ref, o_ref):
    """out = tanh(relu(relu(x@M1+b1) @ M2 + b2) @ W3 + b3).

    Weights are bf16 (HBM-byte win; this kernel is bandwidth-bound), dots are
    bf16 x bf16 with f32 accumulation on the MXU, biases/epilogues stay f32.
    """
    xb = x_ref[...].astype(jnp.bfloat16)
    h1 = jnp.dot(xb, m1_ref[...], preferred_element_type=jnp.float32)
    h1 = jnp.maximum(h1 + b1_ref[...], 0.0)
    h2 = jnp.dot(h1.astype(jnp.bfloat16), m2_ref[...],
                 preferred_element_type=jnp.float32)
    h2 = jnp.maximum(h2 + b2_ref[...], 0.0)
    y = jnp.dot(h2.astype(jnp.bfloat16), w3_ref[...],
                preferred_element_type=jnp.float32)
    o_ref[...] = jnp.tanh(y + b3_ref[...])


# -------------------- init-time weight pre-transformation -------------------

def _conv_as_dense(w, b, H, W, stride, pad):
    """Fold Conv2d(stride, pad) on a fixed HxW image into a dense matrix acting
    on the NCHW-flattened input and producing the NCHW-flattened output."""
    Co, Ci, K, _ = w.shape
    Ho = (H + 2 * pad - K) // stride + 1
    Wo = (W + 2 * pad - K) // stride + 1
    M = np.zeros((Ci * H * W, Co * Ho * Wo), dtype=np.float32)
    for co in range(Co):
        for oy in range(Ho):
            for ox in range(Wo):
                o_idx = (co * Ho + oy) * Wo + ox
                for ci in range(Ci):
                    for ky in range(K):
                        iy = oy * stride - pad + ky
                        if iy < 0 or iy >= H:
                            continue
                        for kx in range(K):
                            ix = ox * stride - pad + kx
                            if ix < 0 or ix >= W:
                                continue
                            M[(ci * H + iy) * W + ix, o_idx] = w[co, ci, ky, kx]
    b_full = np.repeat(np.asarray(b, np.float32), Ho * Wo)
    return M, b_full, Ho, Wo


def init_params(key, width, height, input_channels, rnn_dim, encoder_channels,
                kernel_size):
    C0, C1 = encoder_channels
    pad = (kernel_size - 1) // 2
    fw = width // 2 ** len(encoder_channels)
    fh = height // 2 ** len(encoder_channels)
    feature_dim = C1 * fw * fh
    ks = jax.random.split(key, 6)
    s = 0.1
    params = dict(
        W1=jax.random.normal(ks[0], (C0, input_channels, kernel_size, kernel_size), jnp.float32) * s,
        b1=jax.random.normal(ks[1], (C0,), jnp.float32) * s,
        W2=jax.random.normal(ks[2], (C1, C0, kernel_size, kernel_size), jnp.float32) * s,
        b2=jax.random.normal(ks[3], (C1,), jnp.float32) * s,
        W3=jax.random.normal(ks[4], (rnn_dim, feature_dim), jnp.float32) * s,   # Linear (out,in)
        b3=jax.random.normal(ks[5], (rnn_dim,), jnp.float32) * s,
    )
    cfg = dict(width=width, height=height, Cin=input_channels, C0=C0, C1=C1,
               rnn_dim=rnn_dim, K=kernel_size, pad=pad, feature_dim=feature_dim)
    return params, cfg


def pretransform_params(params, cfg, *, weight_dtype=jnp.bfloat16, lane_pad=128):
    """One-time fold of the PyTorch-layout weights into the fused-kernel layout.

    Conv weights are folded exactly into dense matrices (NCHW flatten order),
    then cast to bf16 (weight-byte reduction for the bandwidth-bound kernel).
    W3/b3 are zero-padded to a 128-lane multiple so the last matmul / store are
    lane-dense; biases stay f32 (f32 epilogue).
    """
    p = jax.tree_util.tree_map(np.asarray, params)
    M1, b1f, Ho1, Wo1 = _conv_as_dense(p['W1'], p['b1'], cfg['height'],
                                       cfg['width'], 2, cfg['pad'])
    M2, b2f, _, _ = _conv_as_dense(p['W2'], p['b2'], Ho1, Wo1, 2, cfg['pad'])
    R = cfg['rnn_dim']
    Rp = _round_up(R, lane_pad)
    W3 = p['W3'].T.astype(np.float32)                      # (feature_dim, R)
    W3p = np.zeros((W3.shape[0], Rp), np.float32)
    W3p[:, :R] = W3
    b3p = np.zeros((1, Rp), np.float32)
    b3p[0, :R] = p['b3'].astype(np.float32)
    return dict(
        M1=jnp.asarray(M1, dtype=weight_dtype),
        b1=jnp.asarray(b1f.reshape(1, -1), dtype=jnp.float32),
        M2=jnp.asarray(M2, dtype=weight_dtype),
        b2=jnp.asarray(b2f.reshape(1, -1), dtype=jnp.float32),
        W3=jnp.asarray(W3p, dtype=weight_dtype),
        b3=jnp.asarray(b3p, dtype=jnp.float32),
        rnn_dim=R,
    )


# ---------------------------------- wrapper ----------------------------------

def encoder_forward(x, dense, *, max_batch_block=256):
    """x: (..., Cin, H, W)  ->  (..., rnn_dim).

    Any leading dims (batch, time, ...) are folded into a single row axis, so
    the folded weights are DMA'd into VMEM once per call instead of once per
    timestep (amortizes the dominant HBM weight traffic)."""
    Din, F1 = dense['M1'].shape
    F2 = dense['M2'].shape[1]
    Rp = dense['W3'].shape[1]
    R = dense['rnn_dim']

    lead = x.shape[:-3]
    B = int(np.prod(lead)) if lead else 1
    x_flat = x.reshape(B, Din).astype(jnp.float32)     # PyTorch NCHW flatten order

    # Aim for >= 2 "parallel" grid steps once B is large enough so both v7x
    # TensorCores run; row tiles are multiples of 8 (sublane) unless a single
    # full-array block is used.
    tb = min(max_batch_block, max(8, _round_up(pl.cdiv(B, 2), 8)))
    if tb >= B:
        tb = B
    grid = (pl.cdiv(B, tb),)
    # NOTE: when B % tb != 0 the padded tail rows of the last block compute on
    # uninitialized data and are discarded by Pallas at writeback -- benign; do
    # not add masking for it.

    out = pl.pallas_call(
        _encoder_kernel,
        out_shape=jax.ShapeDtypeStruct((B, Rp), jnp.float32),
        grid=grid,
        in_specs=[
            pl.BlockSpec((tb, Din), lambda i: (i, 0)),   # batch-tiled input rows
            # Constant-index weight/bias blocks (VMEM-resident across steps).
            # TODO(synk): single-buffer these (pl.Buffered(1)) once confirmed
            # supported for constant index_maps; at bf16 sizes (~1.3 MiB total)
            # the default double-buffer fits every generation's scoped VMEM.
            pl.BlockSpec((Din, F1), lambda i: (0, 0)),   # folded conv1 (bf16)
            pl.BlockSpec((1, F1), lambda i: (0, 0)),     # conv1 bias (f32)
            pl.BlockSpec((F1, F2), lambda i: (0, 0)),    # folded conv2 (bf16)
            pl.BlockSpec((1, F2), lambda i: (0, 0)),     # conv2 bias (f32)
            pl.BlockSpec((F2, Rp), lambda i: (0, 0)),    # linear, lane-padded (bf16)
            pl.BlockSpec((1, Rp), lambda i: (0, 0)),     # linear bias (f32)
        ],
        out_specs=pl.BlockSpec((tb, Rp), lambda i: (i, 0)),   # lane-dense store
        compiler_params=pltpu.CompilerParams(
            dimension_semantics=("parallel",),
            vmem_limit_bytes=32 * 1024 * 1024),
    )(x_flat, dense['M1'], dense['b1'], dense['M2'], dense['b2'],
      dense['W3'], dense['b3'])

    return out[:, :R].reshape(*lead, R)


# ---------- plain-JAX transcription of the kernel math (same bf16 fold) ------

def _dense_forward_jnp(x, dense):
    """Same folded bf16 weights / same casts as the Pallas kernel, via XLA.
    Used as a tight-tolerance check that isolates kernel correctness from the
    bf16 quantization choice."""
    Din = dense['M1'].shape[0]
    R = dense['rnn_dim']
    lead = x.shape[:-3]
    xb = x.reshape(-1, Din).astype(jnp.bfloat16)
    h1 = jnp.maximum(jnp.dot(xb, dense['M1'],
                             preferred_element_type=jnp.float32) + dense['b1'], 0.0)
    h2 = jnp.maximum(jnp.dot(h1.astype(jnp.bfloat16), dense['M2'],
                             preferred_element_type=jnp.float32) + dense['b2'], 0.0)
    y = jnp.dot(h2.astype(jnp.bfloat16), dense['W3'],
                preferred_element_type=jnp.float32) + dense['b3']
    return jnp.tanh(y)[:, :R].reshape(*lead, R)


# ----------------------- numpy reference (PyTorch semantics) -----------------

def _conv2d_np(x, w, b, stride, pad):
    B, Ci, H, W = x.shape
    Co, _, K, _ = w.shape
    Ho = (H + 2 * pad - K) // stride + 1
    Wo = (W + 2 * pad - K) // stride + 1
    xp = np.zeros((B, Ci, H + 2 * pad, W + 2 * pad), dtype=np.float64)
    xp[:, :, pad:pad + H, pad:pad + W] = x
    out = np.zeros((B, Co, Ho, Wo), dtype=np.float64)
    for oy in range(Ho):
        for ox in range(Wo):
            patch = xp[:, :, oy * stride:oy * stride + K, ox * stride:ox * stride + K]
            out[:, :, oy, ox] = np.einsum('bikl,oikl->bo', patch, w)
    return out + b[None, :, None, None]


def _reference_forward_np(x, p, cfg):
    B = x.shape[0]
    x = x.astype(np.float64)
    h1 = np.maximum(_conv2d_np(x, p['W1'].astype(np.float64),
                               p['b1'].astype(np.float64), 2, cfg['pad']), 0.0)
    h2 = np.maximum(_conv2d_np(h1, p['W2'].astype(np.float64),
                               p['b2'].astype(np.float64), 2, cfg['pad']), 0.0)
    h2 = h2.reshape(B, -1)                                  # NCHW .view(B, -1)
    return np.tanh(h2 @ p['W3'].T.astype(np.float64) + p['b3'].astype(np.float64))


# ----------------------------------- main -------------------------------------

if __name__ == "__main__":
    width = height = 16
    input_channels = 4
    encoder_channels = (8, 16)
    kernel_size = 3
    rnn_dim = 32
    batch = 2
    seq = 8

    key = jax.random.PRNGKey(0)
    kp, kx, kt = jax.random.split(key, 3)
    params, cfg = init_params(kp, width, height, input_channels, rnn_dim,
                              encoder_channels, kernel_size)
    dense = pretransform_params(params, cfg)

    # --- single-step call: (B, C, H, W), the module's forward signature -------
    x = jax.random.normal(kx, (batch, input_channels, height, width), jnp.float32)
    out = jax.block_until_ready(encoder_forward(x, dense))
    assert out.shape == (batch, rnn_dim)

    # Kernel-math check vs. a plain-JAX transcription on the SAME bf16 folded
    # weights (tight tolerance: isolates the Pallas kernel from quantization).
    ref_dense = jax.block_until_ready(_dense_forward_jnp(x, dense))
    np.testing.assert_allclose(np.asarray(out), np.asarray(ref_dense),
                               rtol=1e-3, atol=1e-3)

    # End-to-end check vs. the f64 PyTorch-semantics reference.  bf16 rounding
    # of weights/activations contributes ~0.2-0.4% per layer on pre-activations
    # and tanh is a contraction, so 2e-2 is a real error bound for this init,
    # not a blanket loosening.
    np_params = jax.tree_util.tree_map(np.asarray, params)
    ref64 = _reference_forward_np(np.asarray(x), np_params, cfg)
    np.testing.assert_allclose(np.asarray(out), ref64, rtol=2e-2, atol=2e-2)

    # --- time-folded call: (B, T, C, H, W) -> (B, T, rnn_dim) -----------------
    # Folded weights are fetched into VMEM once for all B*T rows (amortized
    # DMA) and the batch grid has >= 2 parallel steps (v7x megacore ready).
    x_seq = jax.random.normal(kt, (batch, seq, input_channels, height, width),
                              jnp.float32)
    out_seq = jax.block_until_ready(encoder_forward(x_seq, dense))
    assert out_seq.shape == (batch, seq, rnn_dim)
    ref64_seq = _reference_forward_np(
        np.asarray(x_seq).reshape(batch * seq, input_channels, height, width),
        np_params, cfg).reshape(batch, seq, rnn_dim)
    np.testing.assert_allclose(np.asarray(out_seq), ref64_seq, rtol=2e-2, atol=2e-2)

    print("KERNEL_OK")
</pallas_src>

<mosaic_0001>
module attributes {stable_mosaic.version = 11 : i64} {
  func.func @_encoder_kernel(%arg0: i32, %arg1: memref<2x1024xf32, #tpu.memory_space<vmem>>, %arg2: memref<1024x512xbf16, #tpu.memory_space<vmem>>, %arg3: memref<1x512xf32, #tpu.memory_space<vmem>>, %arg4: memref<512x256xbf16, #tpu.memory_space<vmem>>, %arg5: memref<1x256xf32, #tpu.memory_space<vmem>>, %arg6: memref<256x128xbf16, #tpu.memory_space<vmem>>, %arg7: memref<1x128xf32, #tpu.memory_space<vmem>>, %arg8: memref<2x128xf32, #tpu.memory_space<vmem>>) attributes {dimension_semantics = [#tpu.dimension_semantics<parallel>], iteration_bounds = array<i64: 1>, scalar_prefetch = 0 : i64, scratch_operands = 0 : i64, tpu.core_type = #tpu.core_type<tc>, window_params = [{transform_indices = @transform_0, window_bounds = array<i64: 2, 1024>}, {pipeline_mode = #tpu.pipeline_mode<synchronous>, transform_indices = @transform_1, window_bounds = array<i64: 1024, 512>}, {pipeline_mode = #tpu.pipeline_mode<synchronous>, transform_indices = @transform_2, window_bounds = array<i64: 1, 512>}, {pipeline_mode = #tpu.pipeline_mode<synchronous>, transform_indices = @transform_3, window_bounds = array<i64: 512, 256>}, {pipeline_mode = #tpu.pipeline_mode<synchronous>, transform_indices = @transform_4, window_bounds = array<i64: 1, 256>}, {pipeline_mode = #tpu.pipeline_mode<synchronous>, transform_indices = @transform_5, window_bounds = array<i64: 256, 128>}, {pipeline_mode = #tpu.pipeline_mode<synchronous>, transform_indices = @transform_6, window_bounds = array<i64: 1, 128>}, {transform_indices = @transform_7, window_bounds = array<i64: 2, 128>}]} {
    %c0 = arith.constant 0 : index
    %c0_0 = arith.constant 0 : index
    %0 = vector.load %arg1[%c0, %c0_0] : memref<2x1024xf32, #tpu.memory_space<vmem>>, vector<2x1024xf32>
    %1 = arith.truncf %0 : vector<2x1024xf32> to vector<2x1024xbf16>
    %c0_1 = arith.constant 0 : index
    %c0_2 = arith.constant 0 : index
    %2 = vector.load %arg2[%c0_1, %c0_2] : memref<1024x512xbf16, #tpu.memory_space<vmem>>, vector<1024x512xbf16>
    %cst = arith.constant dense<0.000000e+00> : vector<2x512xf32>
    %3 = tpu.matmul %1, %2, %cst {dimension_numbers = #tpu.dot_dimension_numbers<[1], [0], [0], [1], [0, 0, 1, 1], [], []>} : vector<2x1024xbf16>, vector<1024x512xbf16>, vector<2x512xf32> -> vector<2x512xf32>
    %c0_3 = arith.constant 0 : index
    %c0_4 = arith.constant 0 : index
    %4 = vector.load %arg3[%c0_3, %c0_4] : memref<1x512xf32, #tpu.memory_space<vmem>>, vector<1x512xf32>
    %5 = vector.broadcast %4 : vector<1x512xf32> to vector<2x512xf32>
    %6 = arith.addf %3, %5 : vector<2x512xf32>
    %cst_5 = arith.constant 0.000000e+00 : f32
    %7 = vector.broadcast %cst_5 : f32 to vector<2x512xf32>
    %8 = arith.maximumf %6, %7 : vector<2x512xf32>
    %9 = arith.truncf %8 : vector<2x512xf32> to vector<2x512xbf16>
    %c0_6 = arith.constant 0 : index
    %c0_7 = arith.constant 0 : index
    %10 = vector.load %arg4[%c0_6, %c0_7] : memref<512x256xbf16, #tpu.memory_space<vmem>>, vector<512x256xbf16>
    %cst_8 = arith.constant dense<0.000000e+00> : vector<2x256xf32>
    %11 = tpu.matmul %9, %10, %cst_8 {dimension_numbers = #tpu.dot_dimension_numbers<[1], [0], [0], [1], [0, 0, 1, 1], [], []>} : vector<2x512xbf16>, vector<512x256xbf16>, vector<2x256xf32> -> vector<2x256xf32>
    %c0_9 = arith.constant 0 : index
    %c0_10 = arith.constant 0 : index
    %12 = vector.load %arg5[%c0_9, %c0_10] : memref<1x256xf32, #tpu.memory_space<vmem>>, vector<1x256xf32>
    %13 = vector.broadcast %12 : vector<1x256xf32> to vector<2x256xf32>
    %14 = arith.addf %11, %13 : vector<2x256xf32>
    %cst_11 = arith.constant 0.000000e+00 : f32
    %15 = vector.broadcast %cst_11 : f32 to vector<2x256xf32>
    %16 = arith.maximumf %14, %15 : vector<2x256xf32>
    %17 = arith.truncf %16 : vector<2x256xf32> to vector<2x256xbf16>
    %c0_12 = arith.constant 0 : index
    %c0_13 = arith.constant 0 : index
    %18 = vector.load %arg6[%c0_12, %c0_13] : memref<256x128xbf16, #tpu.memory_space<vmem>>, vector<256x128xbf16>
    %cst_14 = arith.constant dense<0.000000e+00> : vector<2x128xf32>
    %19 = tpu.matmul %17, %18, %cst_14 {dimension_numbers = #tpu.dot_dimension_numbers<[1], [0], [0], [1], [0, 0, 1, 1], [], []>} : vector<2x256xbf16>, vector<256x128xbf16>, vector<2x128xf32> -> vector<2x128xf32>
    %c0_15 = arith.constant 0 : index
    %c0_16 = arith.constant 0 : index
    %20 = vector.load %arg7[%c0_15, %c0_16] : memref<1x128xf32, #tpu.memory_space<vmem>>, vector<1x128xf32>
    %21 = vector.broadcast %20 : vector<1x128xf32> to vector<2x128xf32>
    %22 = arith.addf %19, %21 : vector<2x128xf32>
    %23 = math.tanh %22 : vector<2x128xf32>
    %c0_17 = arith.constant 0 : index
    %c0_18 = arith.constant 0 : index
    %24 = vector.load %arg8[%c0_17, %c0_18] : memref<2x128xf32, #tpu.memory_space<vmem>>, vector<2x128xf32>
    tpu.vector_store %arg8[%c0_17, %c0_18], %23 {strides = array<i32>} : memref<2x128xf32, #tpu.memory_space<vmem>>, vector<2x128xf32>,
    return
  }
  func.func @transform_0(%arg0: i32) -> (i32, i32) {
    %c0_i32 = arith.constant 0 : i32
    %c0_i32_0 = arith.constant 0 : i32
    return %arg0, %c0_i32 : i32, i32
  }
  func.func @transform_1(%arg0: i32) -> (i32, i32) {
    %c0_i32 = arith.constant 0 : i32
    %c0_i32_0 = arith.constant 0 : i32
    %c0_i32_1 = arith.constant 0 : i32
    return %c0_i32, %c0_i32_0 : i32, i32
  }
  func.func @transform_2(%arg0: i32) -> (i32, i32) {
    %c0_i32 = arith.constant 0 : i32
    %c0_i32_0 = arith.constant 0 : i32
    %c0_i32_1 = arith.constant 0 : i32
    return %c0_i32, %c0_i32_0 : i32, i32
  }
  func.func @transform_3(%arg0: i32) -> (i32, i32) {
    %c0_i32 = arith.constant 0 : i32
    %c0_i32_0 = arith.constant 0 : i32
    %c0_i32_1 = arith.constant 0 : i32
    return %c0_i32, %c0_i32_0 : i32, i32
  }
  func.func @transform_4(%arg0: i32) -> (i32, i32) {
    %c0_i32 = arith.constant 0 : i32
    %c0_i32_0 = arith.constant 0 : i32
    %c0_i32_1 = arith.constant 0 : i32
    return %c0_i32, %c0_i32_0 : i32, i32
  }
  func.func @transform_5(%arg0: i32) -> (i32, i32) {
    %c0_i32 = arith.constant 0 : i32
    %c0_i32_0 = arith.constant 0 : i32
    %c0_i32_1 = arith.constant 0 : i32
    return %c0_i32, %c0_i32_0 : i32, i32
  }
  func.func @transform_6(%arg0: i32) -> (i32, i32) {
    %c0_i32 = arith.constant 0 : i32
    %c0_i32_0 = arith.constant 0 : i32
    %c0_i32_1 = arith.constant 0 : i32
    return %c0_i32, %c0_i32_0 : i32, i32
  }
  func.func @transform_7(%arg0: i32) -> (i32, i32) {
    %c0_i32 = arith.constant 0 : i32
    %c0_i32_0 = arith.constant 0 : i32
    return %arg0, %c0_i32 : i32, i32
  }
}

</mosaic_0001>

<llo_original>
// kernel: tpu_custom_call.1
$region0: #{tpu_custom_call.1}
  #allocation0 [shape = 'u32[]', space=smem, size = 0x4, offset = 0x4, fixed_abs, tag = 'smem constant byte address 0x4 - core index']
  #allocation1 [shape = 'u32[144,128]{1,0:T(1,128)}', space=vmem, size = 0x12000, scoped, tag = 'internal scratch']
  %s0 = inlined_call_operand.hbm [shape: f32[2,1024], index: 0, kind: input, shape index: {}]
  %s1 = inlined_call_operand.hbm [shape: bf16[1024,512], index: 1, kind: input, shape index: {}]
  %s2 = inlined_call_operand.vmem [shape: f32[1,512], index: 2, kind: input, shape index: {}]
  %s3 = inlined_call_operand.hbm [shape: bf16[512,256], index: 3, kind: input, shape index: {}]
  %s4 = inlined_call_operand.vmem [shape: f32[1,256], index: 4, kind: input, shape index: {}]
  %s5 = inlined_call_operand.hbm [shape: bf16[256,128], index: 5, kind: input, shape index: {}]
  %s6 = inlined_call_operand.vmem [shape: f32[1,128], index: 6, kind: input, shape index: {}]
  %s7 = inlined_call_operand.hbm [shape: f32[2,128], index: 7, kind: output, shape index: {}]
  %s8 = sld [smem:[#allocation0]]
  $region54: #{tpu_custom_call.1} parent=0
    _
  %s10 = ssub.s32 1, %s8
  %s11 = scalar_select 0, %s10, %s8
  $region1: #{tpu_custom_call.1} parent=0
    #allocation2 [shape = 'u8[8192]{0}', space=vmem, size = 0x2000, scoped, tag = 'input window, operand 0, single buffered']
    #allocation3 [shape = 's32[1]{0}', space=sflag, size = 0x4, scoped, tag = 'scoped memory for tpu_custom_call.1']
    #allocation4 [shape = 's32[1]{0}', space=sflag, size = 0x4, scoped, tag = 'scoped memory for tpu_custom_call.1']
    #allocation5 [shape = 'u8[1048576]{0}', space=vmem, size = 0x100000, scoped, tag = 'input window, operand 1, single buffered']
    #allocation6 [shape = 's32[1]{0}', space=sflag, size = 0x4, scoped, tag = 'scoped memory for tpu_custom_call.1']
    #allocation7 [shape = 'u8[262144]{0}', space=vmem, size = 0x40000, scoped, tag = 'input window, operand 3, single buffered']
    #allocation8 [shape = 'u8[65536]{0}', space=vmem, size = 0x10000, scoped, tag = 'input window, operand 5, single buffered']
    #allocation9 [shape = 's32[1]{0}', space=sflag, size = 0x4, scoped, tag = 'scoped memory for tpu_custom_call.1']
    #allocation10 [shape = 'u8[1024]{0}', space=vmem, size = 0x400, scoped, tag = 'output window, operand 0, single buffered']
    %12 = vsyncpa [#allocation3], 0
    %13 = vsyncpa [#allocation6], 0
    %14 = vsyncpa [#allocation9], 0
    %15 = vsyncpa [#allocation4], 0
    // Predicated region
    $region2: #{tpu_custom_call.1} parent=1 // pred_check
      _
    $region3: #{tpu_custom_call.1} parent=1 // pred_check_branch
      %17 = sbr.rel (0) target = $region5
    $region4: #{tpu_custom_call.1} parent=1 // pred_region
      %s19 = ssub.s32 256, 256
      %20 = vsyncadd [#allocation3], %s19
      %s22 = sshll.u32 [#allocation2], 4
      %s23 = int_to_ptr.vmem [resolvable:$true] %s22
      %25 = dma.hbm_to_vmem [thread:$0]  %s0, 256, %s23, [#allocation3]
    $region5: #{tpu_custom_call.1} parent=1 // pred_fallthru
      _
    // Predicated region
    $region6: #{tpu_custom_call.1} parent=1 // pred_check
      _
    $region7: #{tpu_custom_call.1} parent=1 // pred_check_branch
      %27 = sbr.rel (0) target = $region9
    $region8: #{tpu_custom_call.1} parent=1 // pred_region
      %s29 = ssub.s32 32768, 32768
      %30 = vsyncadd [#allocation6], %s29
      %s31 = sshll.u32 [#allocation5], 4
      %s32 = int_to_ptr.vmem [resolvable:$true] %s31
      %37 = dma.hbm_to_vmem [thread:$0]  %s1, 32768, %s32, [#allocation6], 256, 256, 16
    $region9: #{tpu_custom_call.1} parent=1 // pred_fallthru
      _
    // Predicated region
    $region10: #{tpu_custom_call.1} parent=1 // pred_check
      _
    $region11: #{tpu_custom_call.1} parent=1 // pred_check_branch
      %39 = sbr.rel (0) target = $region13
    $region12: #{tpu_custom_call.1} parent=1 // pred_region
      _
    $region13: #{tpu_custom_call.1} parent=1 // pred_fallthru
      _
    // Predicated region
    $region14: #{tpu_custom_call.1} parent=1 // pred_check
      _
    $region15: #{tpu_custom_call.1} parent=1 // pred_check_branch
      %41 = sbr.rel (0) target = $region17
    $region16: #{tpu_custom_call.1} parent=1 // pred_region
      %s43 = ssub.s32 8192, 8192
      %44 = vsyncadd [#allocation6], %s43
      %s45 = sshll.u32 [#allocation7], 4
      %s46 = int_to_ptr.vmem [resolvable:$true] %s45
      %51 = dma.hbm_to_vmem [thread:$0]  %s3, 8192, %s46, [#allocation6], 128, 128, 8
    $region17: #{tpu_custom_call.1} parent=1 // pred_fallthru
      _
    // Predicated region
    $region18: #{tpu_custom_call.1} parent=1 // pred_check
      _
    $region19: #{tpu_custom_call.1} parent=1 // pred_check_branch
      %53 = sbr.rel (0) target = $region21
    $region20: #{tpu_custom_call.1} parent=1 // pred_region
      _
    $region21: #{tpu_custom_call.1} parent=1 // pred_fallthru
      _
    // Predicated region
    $region22: #{tpu_custom_call.1} parent=1 // pred_check
      _
    $region23: #{tpu_custom_call.1} parent=1 // pred_check_branch
      %55 = sbr.rel (0) target = $region25
    $region24: #{tpu_custom_call.1} parent=1 // pred_region
      %s57 = ssub.s32 2048, 2048
      %58 = vsyncadd [#allocation9], %s57
      %s59 = sshll.u32 [#allocation8], 4
      %s60 = int_to_ptr.vmem [resolvable:$true] %s59
      %65 = dma.hbm_to_vmem [thread:$0]  %s5, 2048, %s60, [#allocation9], 64, 64, 4
    $region25: #{tpu_custom_call.1} parent=1 // pred_fallthru
      _
    // Predicated region
    $region26: #{tpu_custom_call.1} parent=1 // pred_check
      _
    $region27: #{tpu_custom_call.1} parent=1 // pred_check_branch
      %67 = sbr.rel (0) target = $region29
    $region28: #{tpu_custom_call.1} parent=1 // pred_region
      _
    $region29: #{tpu_custom_call.1} parent=1 // pred_fallthru
      _
    // Predicated region
    $region30: #{tpu_custom_call.1} parent=1 // pred_check
      _
    $region31: #{tpu_custom_call.1} parent=1 // pred_check_branch
      %69 = sbr.rel (0) target = $region33
    $region32: #{tpu_custom_call.1} parent=1 // pred_region
      %70 = dma.done [#allocation3], 256
    $region33: #{tpu_custom_call.1} parent=1 // pred_fallthru
      _
    // Predicated region
    $region34: #{tpu_custom_call.1} parent=1 // pred_check
      _
    $region35: #{tpu_custom_call.1} parent=1 // pred_check_branch
      %72 = sbr.rel (0) target = $region37
    $region36: #{tpu_custom_call.1} parent=1 // pred_region
      %73 = dma.done [#allocation6], 32768
    $region37: #{tpu_custom_call.1} parent=1 // pred_fallthru
      _
    // Predicated region
    $region38: #{tpu_custom_call.1} parent=1 // pred_check
      _
    $region39: #{tpu_custom_call.1} parent=1 // pred_check_branch
      %75 = sbr.rel (0) target = $region41
    $region40: #{tpu_custom_call.1} parent=1 // pred_region
      %76 = dma.done [#allocation6], 8192
    $region41: #{tpu_custom_call.1} parent=1 // pred_fallthru
      _
    // Predicated region
    $region42: #{tpu_custom_call.1} parent=1 // pred_check
      _
    $region43: #{tpu_custom_call.1} parent=1 // pred_check_branch
      %78 = sbr.rel (0) target = $region45
    $region44: #{tpu_custom_call.1} parent=1 // pred_region
      %79 = dma.done [#allocation9], 2048
    $region45: #{tpu_custom_call.1} parent=1 // pred_fallthru
      _
    %v81 = vld [vmem:[#allocation2] sm:$0xff]
    %v82 = vld [vmem:[#allocation2 + $0x8] sm:$0xff]
    %v85 = vcombine.high %v81, %v81
    %v87 = vunpack.c.l.s4 1983009808
    %v88 = vunpack.c.0.s8 %v87
    %v89 = vlaneseq
    %v90 = vshrl.u32 %v89, 7
    %v91 = vsub.s32 %v88, %v90
    %v92 = vrot.slane %v81, %v91
    %v94 = vunpack.c.l.s4 1983009808
    %v95 = vunpack.c.0.s8 %v94
    %v96 = vlaneseq
    %v97 = vshrl.u32 %v96, 7
    %v98 = vsub.s32 %v95, %v97
    %v99 = vrot.slane %v85, %v98
    %v100 = vcombine.high %v92, %v92
    %v101 = vcombine.high %v99, %v99
    %v102 = vcombine.high %v82, %v82
    %v104 = vunpack.c.l.s4 1983009808
    %v105 = vunpack.c.0.s8 %v104
    %v106 = vlaneseq
    %v107 = vshrl.u32 %v106, 7
    %v108 = vsub.s32 %v105, %v107
    %v109 = vrot.slane %v82, %v108
    %v111 = vunpack.c.l.s4 1983009808
    %v112 = vunpack.c.0.s8 %v111
    %v113 = vlaneseq
    %v114 = vshrl.u32 %v113, 7
    %v115 = vsub.s32 %v112, %v114
    %v116 = vrot.slane %v102, %v115
    %v117 = vcombine.high %v109, %v109
    %v118 = vcombine.high %v116, %v116
    %v127 = vpack.c.bf16 %v92, %v92
    %v128 = vpack.c.bf16 %v100, %v100
    %v129 = vpack.c.bf16 %v99, %v99
    %v130 = vpack.c.bf16 %v101, %v101
    %v131 = vpack.c.bf16 %v109, %v109
    %v132 = vpack.c.bf16 %v117, %v117
    %v133 = vpack.c.bf16 %v116, %v116
    %v134 = vpack.c.bf16 %v118, %v118
    %v135 = vld [vmem:[#allocation5] sm:$0xff]
    %v136 = vld [vmem:[#allocation5 + $0x8] sm:$0xff]
    %v137 = vld [vmem:[#allocation5 + $0x10] sm:$0xff]
    %v138 = vld [vmem:[#allocation5 + $0x18] sm:$0xff]
    %v139 = vld [vmem:[#allocation5 + $0x20] sm:$0xff]
    %v140 = vld [vmem:[#allocation5 + $0x28] sm:$0xff]
    %v141 = vld [vmem:[#allocation5 + $0x30] sm:$0xff]
    %v142 = vld [vmem:[#allocation5 + $0x38] sm:$0xff]
    %v143 = vld [vmem:[#allocation5 + $0x40] sm:$0xff]
    %v144 = vld [vmem:[#allocation5 + $0x48] sm:$0xff]
    %v145 = vld [vmem:[#allocation5 + $0x50] sm:$0xff]
    %v146 = vld [vmem:[#allocation5 + $0x58] sm:$0xff]
    %v147 = vld [vmem:[#allocation5 + $0x60] sm:$0xff]
    %v148 = vld [vmem:[#allocation5 + $0x68] sm:$0xff]
    %v149 = vld [vmem:[#allocation5 + $0x70] sm:$0xff]
    %v150 = vld [vmem:[#allocation5 + $0x78] sm:$0xff]
    %v151 = vld [vmem:[#allocation5 + $0x80] sm:$0xff]
    %v152 = vld [vmem:[#allocation5 + $0x88] sm:$0xff]
    %v153 = vld [vmem:[#allocation5 + $0x90] sm:$0xff]
    %v154 = vld [vmem:[#allocation5 + $0x98] sm:$0xff]
    %v155 = vld [vmem:[#allocation5 + $0xa0] sm:$0xff]
    %v156 = vld [vmem:[#allocation5 + $0xa8] sm:$0xff]
    %v157 = vld [vmem:[#allocation5 + $0xb0] sm:$0xff]
    %v158 = vld [vmem:[#allocation5 + $0xb8] sm:$0xff]
    %v159 = vld [vmem:[#allocation5 + $0xc0] sm:$0xff]
    %v160 = vld [vmem:[#allocation5 + $0xc8] sm:$0xff]
    %v161 = vld [vmem:[#allocation5 + $0xd0] sm:$0xff]
    %v162 = vld [vmem:[#allocation5 + $0xd8] sm:$0xff]
    %v163 = vld [vmem:[#allocation5 + $0xe0] sm:$0xff]
    %v164 = vld [vmem:[#allocation5 + $0xe8] sm:$0xff]
    %v165 = vld [vmem:[#allocation5 + $0xf0] sm:$0xff]
    %v166 = vld [vmem:[#allocation5 + $0xf8] sm:$0xff]
    %v167 = vld [vmem:[#allocation5 + $0x100] sm:$0xff]
    %v168 = vld [vmem:[#allocation5 + $0x108] sm:$0xff]
    %v169 = vld [vmem:[#allocation5 + $0x110] sm:$0xff]
    %v170 = vld [vmem:[#allocation5 + $0x118] sm:$0xff]
    %v171 = vld [vmem:[#allocation5 + $0x120] sm:$0xff]
    %v172 = vld [vmem:[#allocation5 + $0x128] sm:$0xff]
    %v173 = vld [vmem:[#allocation5 + $0x130] sm:$0xff]
    %v174 = vld [vmem:[#allocation5 + $0x138] sm:$0xff]
    %v175 = vld [vmem:[#allocation5 + $0x140] sm:$0xff]
    %v176 = vld [vmem:[#allocation5 + $0x148] sm:$0xff]
    %v177 = vld [vmem:[#allocation5 + $0x150] sm:$0xff]
    %v178 = vld [vmem:[#allocation5 + $0x158] sm:$0xff]
    %v179 = vld [vmem:[#allocation5 + $0x160] sm:$0xff]
    %v180 = vld [vmem:[#allocation5 + $0x168] sm:$0xff]
    %v181 = vld [vmem:[#allocation5 + $0x170] sm:$0xff]
    %v182 = vld [vmem:[#allocation5 + $0x178] sm:$0xff]
    %v183 = vld [vmem:[#allocation5 + $0x180] sm:$0xff]
    %v184 = vld [vmem:[#allocation5 + $0x188] sm:$0xff]
    %v185 = vld [vmem:[#allocation5 + $0x190] sm:$0xff]
    %v186 = vld [vmem:[#allocation5 + $0x198] sm:$0xff]
    %v187 = vld [vmem:[#allocation5 + $0x1a0] sm:$0xff]
    %v188 = vld [vmem:[#allocation5 + $0x1a8] sm:$0xff]
    %v189 = vld [vmem:[#allocation5 + $0x1b0] sm:$0xff]
    %v190 = vld [vmem:[#allocation5 + $0x1b8] sm:$0xff]
    %v191 = vld [vmem:[#allocation5 + $0x1c0] sm:$0xff]
    %v192 = vld [vmem:[#allocation5 + $0x1c8] sm:$0xff]
    %v193 = vld [vmem:[#allocation5 + $0x1d0] sm:$0xff]
    %v194 = vld [vmem:[#allocation5 + $0x1d8] sm:$0xff]
    %v195 = vld [vmem:[#allocation5 + $0x1e0] sm:$0xff]
    %v196 = vld [vmem:[#allocation5 + $0x1e8] sm:$0xff]
    %v197 = vld [vmem:[#allocation5 + $0x1f0] sm:$0xff]
    %v198 = vld [vmem:[#allocation5 + $0x1f8] sm:$0xff]
    %v199 = vld [vmem:[#allocation5 + $0x200] sm:$0xff]
    %v200 = vld [vmem:[#allocation5 + $0x208] sm:$0xff]
    %v201 = vld [vmem:[#allocation5 + $0x210] sm:$0xff]
    %v202 = vld [vmem:[#allocation5 + $0x218] sm:$0xff]
    %v203 = vld [vmem:[#allocation5 + $0x220] sm:$0xff]
    %v204 = vld [vmem:[#allocation5 + $0x228] sm:$0xff]
    %v205 = vld [vmem:[#allocation5 + $0x230] sm:$0xff]
    %v206 = vld [vmem:[#allocation5 + $0x238] sm:$0xff]
    %v207 = vld [vmem:[#allocation5 + $0x240] sm:$0xff]
    %v208 = vld [vmem:[#allocation5 + $0x248] sm:$0xff]
    %v209 = vld [vmem:[#allocation5 + $0x250] sm:$0xff]
    %v210 = vld [vmem:[#allocation5 + $0x258] sm:$0xff]
    %v211 = vld [vmem:[#allocation5 + $0x260] sm:$0xff]
    %v212 = vld [vmem:[#allocation5 + $0x268] sm:$0xff]
    %v213 = vld [vmem:[#allocation5 + $0x270] sm:$0xff]
    %v214 = vld [vmem:[#allocation5 + $0x278] sm:$0xff]
    %v215 = vld [vmem:[#allocation5 + $0x280] sm:$0xff]
    %v216 = vld [vmem:[#allocation5 + $0x288] sm:$0xff]
    %v217 = vld [vmem:[#allocation5 + $0x290] sm:$0xff]
    %v218 = vld [vmem:[#allocation5 + $0x298] sm:$0xff]
    %v219 = vld [vmem:[#allocation5 + $0x2a0] sm:$0xff]
    %v220 = vld [vmem:[#allocation5 + $0x2a8] sm:$0xff]
    %v221 = vld [vmem:[#allocation5 + $0x2b0] sm:$0xff]
    %v222 = vld [vmem:[#allocation5 + $0x2b8] sm:$0xff]
    %v223 = vld [vmem:[#allocation5 + $0x2c0] sm:$0xff]
    %v224 = vld [vmem:[#allocation5 + $0x2c8] sm:$0xff]
    %v225 = vld [vmem:[#allocation5 + $0x2d0] sm:$0xff]
    %v226 = vld [vmem:[#allocation5 + $0x2d8] sm:$0xff]
    %v227 = vld [vmem:[#allocation5 + $0x2e0] sm:$0xff]
    %v228 = vld [vmem:[#allocation5 + $0x2e8] sm:$0xff]
    %v229 = vld [vmem:[#allocation5 + $0x2f0] sm:$0xff]
    %v230 = vld [vmem:[#allocation5 + $0x2f8] sm:$0xff]
    %v231 = vld [vmem:[#allocation5 + $0x300] sm:$0xff]
    %v232 = vld [vmem:[#allocation5 + $0x308] sm:$0xff]
    %v233 = vld [vmem:[#allocation5 + $0x310] sm:$0xff]
    %v234 = vld [vmem:[#allocation5 + $0x318] sm:$0xff]
    %v235 = vld [vmem:[#allocation5 + $0x320] sm:$0xff]
    %v236 = vld [vmem:[#allocation5 + $0x328] sm:$0xff]
    %v237 = vld [vmem:[#allocation5 + $0x330] sm:$0xff]
    %v238 = vld [vmem:[#allocation5 + $0x338] sm:$0xff]
    %v239 = vld [vmem:[#allocation5 + $0x340] sm:$0xff]
    %v240 = vld [vmem:[#allocation5 + $0x348] sm:$0xff]
    %v241 = vld [vmem:[#allocation5 + $0x350] sm:$0xff]
    %v242 = vld [vmem:[#allocation5 + $0x358] sm:$0xff]
    %v243 = vld [vmem:[#allocation5 + $0x360] sm:$0xff]
    %v244 = vld [vmem:[#allocation5 + $0x368] sm:$0xff]
    %v245 = vld [vmem:[#allocation5 + $0x370] sm:$0xff]
    %v246 = vld [vmem:[#allocation5 + $0x378] sm:$0xff]
    %v247 = vld [vmem:[#allocation5 + $0x380] sm:$0xff]
    %v248 = vld [vmem:[#allocation5 + $0x388] sm:$0xff]
    %v249 = vld [vmem:[#allocation5 + $0x390] sm:$0xff]
    %v250 = vld [vmem:[#allocation5 + $0x398] sm:$0xff]
    %v251 = vld [vmem:[#allocation5 + $0x3a0] sm:$0xff]
    %v252 = vld [vmem:[#allocation5 + $0x3a8] sm:$0xff]
    %v253 = vld [vmem:[#allocation5 + $0x3b0] sm:$0xff]
    %v254 = vld [vmem:[#allocation5 + $0x3b8] sm:$0xff]
    %v255 = vld [vmem:[#allocation5 + $0x3c0] sm:$0xff]
    %v256 = vld [vmem:[#allocation5 + $0x3c8] sm:$0xff]
    %v257 = vld [vmem:[#allocation5 + $0x3d0] sm:$0xff]
    %v258 = vld [vmem:[#allocation5 + $0x3d8] sm:$0xff]
    %v259 = vld [vmem:[#allocation5 + $0x3e0] sm:$0xff]
    %v260 = vld [vmem:[#allocation5 + $0x3e8] sm:$0xff]
    %v261 = vld [vmem:[#allocation5 + $0x3f0] sm:$0xff]
    %v262 = vld [vmem:[#allocation5 + $0x3f8] sm:$0xff]
    %v263 = vld [vmem:[#allocation5 + $0x400] sm:$0xff]
    %v264 = vld [vmem:[#allocation5 + $0x408] sm:$0xff]
    %v265 = vld [vmem:[#allocation5 + $0x410] sm:$0xff]
    %v266 = vld [vmem:[#allocation5 + $0x418] sm:$0xff]
    %v267 = vld [vmem:[#allocation5 + $0x420] sm:$0xff]
    %v268 = vld [vmem:[#allocation5 + $0x428] sm:$0xff]
    %v269 = vld [vmem:[#allocation5 + $0x430] sm:$0xff]
    %v270 = vld [vmem:[#allocation5 + $0x438] sm:$0xff]
    %v271 = vld [vmem:[#allocation5 + $0x440] sm:$0xff]
    %v272 = vld [vmem:[#allocation5 + $0x448] sm:$0xff]
    %v273 = vld [vmem:[#allocation5 + $0x450] sm:$0xff]
    %v274 = vld [vmem:[#allocation5 + $0x458] sm:$0xff]
    %v275 = vld [vmem:[#allocation5 + $0x460] sm:$0xff]
    %v276 = vld [vmem:[#allocation5 + $0x468] sm:$0xff]
    %v277 = vld [vmem:[#allocation5 + $0x470] sm:$0xff]
    %v278 = vld [vmem:[#allocation5 + $0x478] sm:$0xff]
    %v279 = vld [vmem:[#allocation5 + $0x480] sm:$0xff]
    %v280 = vld [vmem:[#allocation5 + $0x488] sm:$0xff]
    %v281 = vld [vmem:[#allocation5 + $0x490] sm:$0xff]
    %v282 = vld [vmem:[#allocation5 + $0x498] sm:$0xff]
    %v283 = vld [vmem:[#allocation5 + $0x4a0] sm:$0xff]
    %v284 = vld [vmem:[#allocation5 + $0x4a8] sm:$0xff]
    %v285 = vld [vmem:[#allocation5 + $0x4b0] sm:$0xff]
    %v286 = vld [vmem:[#allocation5 + $0x4b8] sm:$0xff]
    %v287 = vld [vmem:[#allocation5 + $0x4c0] sm:$0xff]
    %v288 = vld [vmem:[#allocation5 + $0x4c8] sm:$0xff]
    %v289 = vld [vmem:[#allocation5 + $0x4d0] sm:$0xff]
    %v290 = vld [vmem:[#allocation5 + $0x4d8] sm:$0xff]
    %v291 = vld [vmem:[#allocation5 + $0x4e0] sm:$0xff]
    %v292 = vld [vmem:[#allocation5 + $0x4e8] sm:$0xff]
    %v293 = vld [vmem:[#allocation5 + $0x4f0] sm:$0xff]
    %v294 = vld [vmem:[#allocation5 + $0x4f8] sm:$0xff]
    %v295 = vld [vmem:[#allocation5 + $0x500] sm:$0xff]
    %v296 = vld [vmem:[#allocation5 + $0x508] sm:$0xff]
    %v297 = vld [vmem:[#allocation5 + $0x510] sm:$0xff]
    %v298 = vld [vmem:[#allocation5 + $0x518] sm:$0xff]
    %v299 = vld [vmem:[#allocation5 + $0x520] sm:$0xff]
    %v300 = vld [vmem:[#allocation5 + $0x528] sm:$0xff]
    %v301 = vld [vmem:[#allocation5 + $0x530] sm:$0xff]
    %v302 = vld [vmem:[#allocation5 + $0x538] sm:$0xff]
    %v303 = vld [vmem:[#allocation5 + $0x540] sm:$0xff]
    %v304 = vld [vmem:[#allocation5 + $0x548] sm:$0xff]
    %v305 = vld [vmem:[#allocation5 + $0x550] sm:$0xff]
    %v306 = vld [vmem:[#allocation5 + $0x558] sm:$0xff]
    %v307 = vld [vmem:[#allocation5 + $0x560] sm:$0xff]
    %v308 = vld [vmem:[#allocation5 + $0x568] sm:$0xff]
    %v309 = vld [vmem:[#allocation5 + $0x570] sm:$0xff]
    %v310 = vld [vmem:[#allocation5 + $0x578] sm:$0xff]
    %v311 = vld [vmem:[#allocation5 + $0x580] sm:$0xff]
    %v312 = vld [vmem:[#allocation5 + $0x588] sm:$0xff]
    %v313 = vld [vmem:[#allocation5 + $0x590] sm:$0xff]
    %v314 = vld [vmem:[#allocation5 + $0x598] sm:$0xff]
    %v315 = vld [vmem:[#allocation5 + $0x5a0] sm:$0xff]
    %v316 = vld [vmem:[#allocation5 + $0x5a8] sm:$0xff]
    %v317 = vld [vmem:[#allocation5 + $0x5b0] sm:$0xff]
    %v318 = vld [vmem:[#allocation5 + $0x5b8] sm:$0xff]
    %v319 = vld [vmem:[#allocation5 + $0x5c0] sm:$0xff]
    %v320 = vld [vmem:[#allocation5 + $0x5c8] sm:$0xff]
    %v321 = vld [vmem:[#allocation5 + $0x5d0] sm:$0xff]
    %v322 = vld [vmem:[#allocation5 + $0x5d8] sm:$0xff]
    %v323 = vld [vmem:[#allocation5 + $0x5e0] sm:$0xff]
    %v324 = vld [vmem:[#allocation5 + $0x5e8] sm:$0xff]
    %v325 = vld [vmem:[#allocation5 + $0x5f0] sm:$0xff]
    %v326 = vld [vmem:[#allocation5 + $0x5f8] sm:$0xff]
    %v327 = vld [vmem:[#allocation5 + $0x600] sm:$0xff]
    %v328 = vld [vmem:[#allocation5 + $0x608] sm:$0xff]
    %v329 = vld [vmem:[#allocation5 + $0x610] sm:$0xff]
    %v330 = vld [vmem:[#allocation5 + $0x618] sm:$0xff]
    %v331 = vld [vmem:[#allocation5 + $0x620] sm:$0xff]
    %v332 = vld [vmem:[#allocation5 + $0x628] sm:$0xff]
    %v333 = vld [vmem:[#allocation5 + $0x630] sm:$0xff]
    %v334 = vld [vmem:[#allocation5 + $0x638] sm:$0xff]
    %v335 = vld [vmem:[#allocation5 + $0x640] sm:$0xff]
    %v336 = vld [vmem:[#allocation5 + $0x648] sm:$0xff]
    %v337 = vld [vmem:[#allocation5 + $0x650] sm:$0xff]
    %v338 = vld [vmem:[#allocation5 + $0x658] sm:$0xff]
    %v339 = vld [vmem:[#allocation5 + $0x660] sm:$0xff]
    %v340 = vld [vmem:[#allocation5 + $0x668] sm:$0xff]
    %v341 = vld [vmem:[#allocation5 + $0x670] sm:$0xff]
    %v342 = vld [vmem:[#allocation5 + $0x678] sm:$0xff]
    %v343 = vld [vmem:[#allocation5 + $0x680] sm:$0xff]
    %v344 = vld [vmem:[#allocation5 + $0x688] sm:$0xff]
    %v345 = vld [vmem:[#allocation5 + $0x690] sm:$0xff]
    %v346 = vld [vmem:[#allocation5 + $0x698] sm:$0xff]
    %v347 = vld [vmem:[#allocation5 + $0x6a0] sm:$0xff]
    %v348 = vld [vmem:[#allocation5 + $0x6a8] sm:$0xff]
    %v349 = vld [vmem:[#allocation5 + $0x6b0] sm:$0xff]
    %v350 = vld [vmem:[#allocation5 + $0x6b8] sm:$0xff]
    %v351 = vld [vmem:[#allocation5 + $0x6c0] sm:$0xff]
    %v352 = vld [vmem:[#allocation5 + $0x6c8] sm:$0xff]
    %v353 = vld [vmem:[#allocation5 + $0x6d0] sm:$0xff]
    %v354 = vld [vmem:[#allocation5 + $0x6d8] sm:$0xff]
    %v355 = vld [vmem:[#allocation5 + $0x6e0] sm:$0xff]
    %v356 = vld [vmem:[#allocation5 + $0x6e8] sm:$0xff]
    %v357 = vld [vmem:[#allocation5 + $0x6f0] sm:$0xff]
    %v358 = vld [vmem:[#allocation5 + $0x6f8] sm:$0xff]
    %v359 = vld [vmem:[#allocation5 + $0x700] sm:$0xff]
    %v360 = vld [vmem:[#allocation5 + $0x708] sm:$0xff]
    %v361 = vld [vmem:[#allocation5 + $0x710] sm:$0xff]
    %v362 = vld [vmem:[#allocation5 + $0x718] sm:$0xff]
    %v363 = vld [vmem:[#allocation5 + $0x720] sm:$0xff]
    %v364 = vld [vmem:[#allocation5 + $0x728] sm:$0xff]
    %v365 = vld [vmem:[#allocation5 + $0x730] sm:$0xff]
    %v366 = vld [vmem:[#allocation5 + $0x738] sm:$0xff]
    %v367 = vld [vmem:[#allocation5 + $0x740] sm:$0xff]
    %v368 = vld [vmem:[#allocation5 + $0x748] sm:$0xff]
    %v369 = vld [vmem:[#allocation5 + $0x750] sm:$0xff]
    %v370 = vld [vmem:[#allocation5 + $0x758] sm:$0xff]
    %v371 = vld [vmem:[#allocation5 + $0x760] sm:$0xff]
    %v372 = vld [vmem:[#allocation5 + $0x768] sm:$0xff]
    %v373 = vld [vmem:[#allocation5 + $0x770] sm:$0xff]
    %v374 = vld [vmem:[#allocation5 + $0x778] sm:$0xff]
    %v375 = vld [vmem:[#allocation5 + $0x780] sm:$0xff]
    %v376 = vld [vmem:[#allocation5 + $0x788] sm:$0xff]
    %v377 = vld [vmem:[#allocation5 + $0x790] sm:$0xff]
    %v378 = vld [vmem:[#allocation5 + $0x798] sm:$0xff]
    %v379 = vld [vmem:[#allocation5 + $0x7a0] sm:$0xff]
    %v380 = vld [vmem:[#allocation5 + $0x7a8] sm:$0xff]
    %v381 = vld [vmem:[#allocation5 + $0x7b0] sm:$0xff]
    %v382 = vld [vmem:[#allocation5 + $0x7b8] sm:$0xff]
    %v383 = vld [vmem:[#allocation5 + $0x7c0] sm:$0xff]
    %v384 = vld [vmem:[#allocation5 + $0x7c8] sm:$0xff]
    %v385 = vld [vmem:[#allocation5 + $0x7d0] sm:$0xff]
    %v386 = vld [vmem:[#allocation5 + $0x7d8] sm:$0xff]
    %v387 = vld [vmem:[#allocation5 + $0x7e0] sm:$0xff]
    %v388 = vld [vmem:[#allocation5 + $0x7e8] sm:$0xff]
    %v389 = vld [vmem:[#allocation5 + $0x7f0] sm:$0xff]
    %v390 = vld [vmem:[#allocation5 + $0x7f8] sm:$0xff]
    %v391 = vld [vmem:[%s2] sm:$0xf]
    %v393 = vlaneseq
    %v394 = vshrl.u32 %v393, 7
    %v395 = vsub.s32 0, %v394
    %v396 = vrot.slane %v391, %v395
    %v397 = vlaneseq
    %v398 = vshrl.u32 %v397, 7
    %v399 = vsub.s32 1, %v398
    %v400 = vrot.slane %v391, %v399
    %v401 = vlaneseq
    %v402 = vshrl.u32 %v401, 7
    %v403 = vsub.s32 2, %v402
    %v404 = vrot.slane %v391, %v403
    %v405 = vlaneseq
    %v406 = vshrl.u32 %v405, 7
    %v407 = vsub.s32 3, %v406
    %v408 = vrot.slane %v391, %v407
    %v669 = vunpack.c.l.b16 %v135
    %v670 = vunpack.c.h.b16 %v135
    %v671 = vunpack.c.l.b16 %v136
    %v672 = vunpack.c.h.b16 %v136
    %v673 = vunpack.c.l.b16 %v137
    %v674 = vunpack.c.h.b16 %v137
    %v675 = vunpack.c.l.b16 %v138
    %v676 = vunpack.c.h.b16 %v138
    %v677 = vunpack.c.l.b16 %v139
    %v678 = vunpack.c.h.b16 %v139
    %v679 = vunpack.c.l.b16 %v140
    %v680 = vunpack.c.h.b16 %v140
    %v681 = vunpack.c.l.b16 %v141
    %v682 = vunpack.c.h.b16 %v141
    %v683 = vunpack.c.l.b16 %v142
    %v684 = vunpack.c.h.b16 %v142
    %v685 = vunpack.c.l.b16 %v143
    %v686 = vunpack.c.h.b16 %v143
    %v687 = vunpack.c.l.b16 %v144
    %v688 = vunpack.c.h.b16 %v144
    %v689 = vunpack.c.l.b16 %v145
    %v690 = vunpack.c.h.b16 %v145
    %v691 = vunpack.c.l.b16 %v146
    %v692 = vunpack.c.h.b16 %v146
    %v693 = vunpack.c.l.b16 %v147
    %v694 = vunpack.c.h.b16 %v147
    %v695 = vunpack.c.l.b16 %v148
    %v696 = vunpack.c.h.b16 %v148
    %v697 = vunpack.c.l.b16 %v149
    %v698 = vunpack.c.h.b16 %v149
    %v699 = vunpack.c.l.b16 %v150
    %v700 = vunpack.c.h.b16 %v150
    %v701 = vunpack.c.l.b16 %v151
    %v702 = vunpack.c.h.b16 %v151
    %v703 = vunpack.c.l.b16 %v152
    %v704 = vunpack.c.h.b16 %v152
    %v705 = vunpack.c.l.b16 %v153
    %v706 = vunpack.c.h.b16 %v153
    %v707 = vunpack.c.l.b16 %v154
    %v708 = vunpack.c.h.b16 %v154
    %v709 = vunpack.c.l.b16 %v155
    %v710 = vunpack.c.h.b16 %v155
    %v711 = vunpack.c.l.b16 %v156
    %v712 = vunpack.c.h.b16 %v156
    %v713 = vunpack.c.l.b16 %v157
    %v714 = vunpack.c.h.b16 %v157
    %v715 = vunpack.c.l.b16 %v158
    %v716 = vunpack.c.h.b16 %v158
    %v717 = vunpack.c.l.b16 %v159
    %v718 = vunpack.c.h.b16 %v159
    %v719 = vunpack.c.l.b16 %v160
    %v720 = vunpack.c.h.b16 %v160
    %v721 = vunpack.c.l.b16 %v161
    %v722 = vunpack.c.h.b16 %v161
    %v723 = vunpack.c.l.b16 %v162
    %v724 = vunpack.c.h.b16 %v162
    %v725 = vunpack.c.l.b16 %v163
    %v726 = vunpack.c.h.b16 %v163
    %v727 = vunpack.c.l.b16 %v164
    %v728 = vunpack.c.h.b16 %v164
    %v729 = vunpack.c.l.b16 %v165
    %v730 = vunpack.c.h.b16 %v165
    %v731 = vunpack.c.l.b16 %v166
    %v732 = vunpack.c.h.b16 %v166
    %v733 = vunpack.c.l.b16 %v167
    %v734 = vunpack.c.h.b16 %v167
    %v735 = vunpack.c.l.b16 %v168
    %v736 = vunpack.c.h.b16 %v168
    %v737 = vunpack.c.l.b16 %v169
    %v738 = vunpack.c.h.b16 %v169
    %v739 = vunpack.c.l.b16 %v170
    %v740 = vunpack.c.h.b16 %v170
    %v741 = vunpack.c.l.b16 %v171
    %v742 = vunpack.c.h.b16 %v171
    %v743 = vunpack.c.l.b16 %v172
    %v744 = vunpack.c.h.b16 %v172
    %v745 = vunpack.c.l.b16 %v173
    %v746 = vunpack.c.h.b16 %v173
    %v747 = vunpack.c.l.b16 %v174
    %v748 = vunpack.c.h.b16 %v174
    %v749 = vunpack.c.l.b16 %v175
    %v750 = vunpack.c.h.b16 %v175
    %v751 = vunpack.c.l.b16 %v176
    %v752 = vunpack.c.h.b16 %v176
    %v753 = vunpack.c.l.b16 %v177
    %v754 = vunpack.c.h.b16 %v177
    %v755 = vunpack.c.l.b16 %v178
    %v756 = vunpack.c.h.b16 %v178
    %v757 = vunpack.c.l.b16 %v179
    %v758 = vunpack.c.h.b16 %v179
    %v759 = vunpack.c.l.b16 %v180
    %v760 = vunpack.c.h.b16 %v180
    %v761 = vunpack.c.l.b16 %v181
    %v762 = vunpack.c.h.b16 %v181
    %v763 = vunpack.c.l.b16 %v182
    %v764 = vunpack.c.h.b16 %v182
    %v765 = vunpack.c.l.b16 %v183
    %v766 = vunpack.c.h.b16 %v183
    %v767 = vunpack.c.l.b16 %v184
    %v768 = vunpack.c.h.b16 %v184
    %v769 = vunpack.c.l.b16 %v185
    %v770 = vunpack.c.h.b16 %v185
    %v771 = vunpack.c.l.b16 %v186
    %v772 = vunpack.c.h.b16 %v186
    %v773 = vunpack.c.l.b16 %v187
    %v774 = vunpack.c.h.b16 %v187
    %v775 = vunpack.c.l.b16 %v188
    %v776 = vunpack.c.h.b16 %v188
    %v777 = vunpack.c.l.b16 %v189
    %v778 = vunpack.c.h.b16 %v189
    %v779 = vunpack.c.l.b16 %v190
    %v780 = vunpack.c.h.b16 %v190
    %v781 = vunpack.c.l.b16 %v191
    %v782 = vunpack.c.h.b16 %v191
    %v783 = vunpack.c.l.b16 %v192
    %v784 = vunpack.c.h.b16 %v192
    %v785 = vunpack.c.l.b16 %v193
    %v786 = vunpack.c.h.b16 %v193
    %v787 = vunpack.c.l.b16 %v194
    %v788 = vunpack.c.h.b16 %v194
    %v789 = vunpack.c.l.b16 %v195
    %v790 = vunpack.c.h.b16 %v195
    %v791 = vunpack.c.l.b16 %v196
    %v792 = vunpack.c.h.b16 %v196
    %v793 = vunpack.c.l.b16 %v197
    %v794 = vunpack.c.h.b16 %v197
    %v795 = vunpack.c.l.b16 %v198
    %v796 = vunpack.c.h.b16 %v198
    %v797 = vunpack.c.l.b16 %v199
    %v798 = vunpack.c.h.b16 %v199
    %v799 = vunpack.c.l.b16 %v200
    %v800 = vunpack.c.h.b16 %v200
    %v801 = vunpack.c.l.b16 %v201
    %v802 = vunpack.c.h.b16 %v201
    %v803 = vunpack.c.l.b16 %v202
    %v804 = vunpack.c.h.b16 %v202
    %v805 = vunpack.c.l.b16 %v203
    %v806 = vunpack.c.h.b16 %v203
    %v807 = vunpack.c.l.b16 %v204
    %v808 = vunpack.c.h.b16 %v204
    %v809 = vunpack.c.l.b16 %v205
    %v810 = vunpack.c.h.b16 %v205
    %v811 = vunpack.c.l.b16 %v206
    %v812 = vunpack.c.h.b16 %v206
    %v813 = vunpack.c.l.b16 %v207
    %v814 = vunpack.c.h.b16 %v207
    %v815 = vunpack.c.l.b16 %v208
    %v816 = vunpack.c.h.b16 %v208
    %v817 = vunpack.c.l.b16 %v209
    %v818 = vunpack.c.h.b16 %v209
    %v819 = vunpack.c.l.b16 %v210
    %v820 = vunpack.c.h.b16 %v210
    %v821 = vunpack.c.l.b16 %v211
    %v822 = vunpack.c.h.b16 %v211
    %v823 = vunpack.c.l.b16 %v212
    %v824 = vunpack.c.h.b16 %v212
    %v825 = vunpack.c.l.b16 %v213
    %v826 = vunpack.c.h.b16 %v213
    %v827 = vunpack.c.l.b16 %v214
    %v828 = vunpack.c.h.b16 %v214
    %v829 = vunpack.c.l.b16 %v215
    %v830 = vunpack.c.h.b16 %v215
    %v831 = vunpack.c.l.b16 %v216
    %v832 = vunpack.c.h.b16 %v216
    %v833 = vunpack.c.l.b16 %v217
    %v834 = vunpack.c.h.b16 %v217
    %v835 = vunpack.c.l.b16 %v218
    %v836 = vunpack.c.h.b16 %v218
    %v837 = vunpack.c.l.b16 %v219
    %v838 = vunpack.c.h.b16 %v219
    %v839 = vunpack.c.l.b16 %v220
    %v840 = vunpack.c.h.b16 %v220
    %v841 = vunpack.c.l.b16 %v221
    %v842 = vunpack.c.h.b16 %v221
    %v843 = vunpack.c.l.b16 %v222
    %v844 = vunpack.c.h.b16 %v222
    %v845 = vunpack.c.l.b16 %v223
    %v846 = vunpack.c.h.b16 %v223
    %v847 = vunpack.c.l.b16 %v224
    %v848 = vunpack.c.h.b16 %v224
    %v849 = vunpack.c.l.b16 %v225
    %v850 = vunpack.c.h.b16 %v225
    %v851 = vunpack.c.l.b16 %v226
    %v852 = vunpack.c.h.b16 %v226
    %v853 = vunpack.c.l.b16 %v227
    %v854 = vunpack.c.h.b16 %v227
    %v855 = vunpack.c.l.b16 %v228
    %v856 = vunpack.c.h.b16 %v228
    %v857 = vunpack.c.l.b16 %v229
    %v858 = vunpack.c.h.b16 %v229
    %v859 = vunpack.c.l.b16 %v230
    %v860 = vunpack.c.h.b16 %v230
    %v861 = vunpack.c.l.b16 %v231
    %v862 = vunpack.c.h.b16 %v231
    %v863 = vunpack.c.l.b16 %v232
    %v864 = vunpack.c.h.b16 %v232
    %v865 = vunpack.c.l.b16 %v233
    %v866 = vunpack.c.h.b16 %v233
    %v867 = vunpack.c.l.b16 %v234
    %v868 = vunpack.c.h.b16 %v234
    %v869 = vunpack.c.l.b16 %v235
    %v870 = vunpack.c.h.b16 %v235
    %v871 = vunpack.c.l.b16 %v236
    %v872 = vunpack.c.h.b16 %v236
    %v873 = vunpack.c.l.b16 %v237
    %v874 = vunpack.c.h.b16 %v237
    %v875 = vunpack.c.l.b16 %v238
    %v876 = vunpack.c.h.b16 %v238
    %v877 = vunpack.c.l.b16 %v239
    %v878 = vunpack.c.h.b16 %v239
    %v879 = vunpack.c.l.b16 %v240
    %v880 = vunpack.c.h.b16 %v240
    %v881 = vunpack.c.l.b16 %v241
    %v882 = vunpack.c.h.b16 %v241
    %v883 = vunpack.c.l.b16 %v242
    %v884 = vunpack.c.h.b16 %v242
    %v885 = vunpack.c.l.b16 %v243
    %v886 = vunpack.c.h.b16 %v243
    %v887 = vunpack.c.l.b16 %v244
    %v888 = vunpack.c.h.b16 %v244
    %v889 = vunpack.c.l.b16 %v245
    %v890 = vunpack.c.h.b16 %v245
    %v891 = vunpack.c.l.b16 %v246
    %v892 = vunpack.c.h.b16 %v246
    %v893 = vunpack.c.l.b16 %v247
    %v894 = vunpack.c.h.b16 %v247
    %v895 = vunpack.c.l.b16 %v248
    %v896 = vunpack.c.h.b16 %v248
    %v897 = vunpack.c.l.b16 %v249
    %v898 = vunpack.c.h.b16 %v249
    %v899 = vunpack.c.l.b16 %v250
    %v900 = vunpack.c.h.b16 %v250
    %v901 = vunpack.c.l.b16 %v251
    %v902 = vunpack.c.h.b16 %v251
    %v903 = vunpack.c.l.b16 %v252
    %v904 = vunpack.c.h.b16 %v252
    %v905 = vunpack.c.l.b16 %v253
    %v906 = vunpack.c.h.b16 %v253
    %v907 = vunpack.c.l.b16 %v254
    %v908 = vunpack.c.h.b16 %v254
    %v909 = vunpack.c.l.b16 %v255
    %v910 = vunpack.c.h.b16 %v255
    %v911 = vunpack.c.l.b16 %v256
    %v912 = vunpack.c.h.b16 %v256
    %v913 = vunpack.c.l.b16 %v257
    %v914 = vunpack.c.h.b16 %v257
    %v915 = vunpack.c.l.b16 %v258
    %v916 = vunpack.c.h.b16 %v258
    %v917 = vunpack.c.l.b16 %v259
    %v918 = vunpack.c.h.b16 %v259
    %v919 = vunpack.c.l.b16 %v260
    %v920 = vunpack.c.h.b16 %v260
    %v921 = vunpack.c.l.b16 %v261
    %v922 = vunpack.c.h.b16 %v261
    %v923 = vunpack.c.l.b16 %v262
    %v924 = vunpack.c.h.b16 %v262
    %v925 = vunpack.c.l.b16 %v263
    %v926 = vunpack.c.h.b16 %v263
    %v927 = vunpack.c.l.b16 %v264
    %v928 = vunpack.c.h.b16 %v264
    %v929 = vunpack.c.l.b16 %v265
    %v930 = vunpack.c.h.b16 %v265
    %v931 = vunpack.c.l.b16 %v266
    %v932 = vunpack.c.h.b16 %v266
    %v933 = vunpack.c.l.b16 %v267
    %v934 = vunpack.c.h.b16 %v267
    %v935 = vunpack.c.l.b16 %v268
    %v936 = vunpack.c.h.b16 %v268
    %v937 = vunpack.c.l.b16 %v269
    %v938 = vunpack.c.h.b16 %v269
    %v939 = vunpack.c.l.b16 %v270
    %v940 = vunpack.c.h.b16 %v270
    %v941 = vunpack.c.l.b16 %v271
    %v942 = vunpack.c.h.b16 %v271
    %v943 = vunpack.c.l.b16 %v272
    %v944 = vunpack.c.h.b16 %v272
    %v945 = vunpack.c.l.b16 %v273
    %v946 = vunpack.c.h.b16 %v273
    %v947 = vunpack.c.l.b16 %v274
    %v948 = vunpack.c.h.b16 %v274
    %v949 = vunpack.c.l.b16 %v275
    %v950 = vunpack.c.h.b16 %v275
    %v951 = vunpack.c.l.b16 %v276
    %v952 = vunpack.c.h.b16 %v276
    %v953 = vunpack.c.l.b16 %v277
    %v954 = vunpack.c.h.b16 %v277
    %v955 = vunpack.c.l.b16 %v278
    %v956 = vunpack.c.h.b16 %v278
    %v957 = vunpack.c.l.b16 %v279
    %v958 = vunpack.c.h.b16 %v279
    %v959 = vunpack.c.l.b16 %v280
    %v960 = vunpack.c.h.b16 %v280
    %v961 = vunpack.c.l.b16 %v281
    %v962 = vunpack.c.h.b16 %v281
    %v963 = vunpack.c.l.b16 %v282
    %v964 = vunpack.c.h.b16 %v282
    %v965 = vunpack.c.l.b16 %v283
    %v966 = vunpack.c.h.b16 %v283
    %v967 = vunpack.c.l.b16 %v284
    %v968 = vunpack.c.h.b16 %v284
    %v969 = vunpack.c.l.b16 %v285
    %v970 = vunpack.c.h.b16 %v285
    %v971 = vunpack.c.l.b16 %v286
    %v972 = vunpack.c.h.b16 %v286
    %v973 = vunpack.c.l.b16 %v287
    %v974 = vunpack.c.h.b16 %v287
    %v975 = vunpack.c.l.b16 %v288
    %v976 = vunpack.c.h.b16 %v288
    %v977 = vunpack.c.l.b16 %v289
    %v978 = vunpack.c.h.b16 %v289
    %v979 = vunpack.c.l.b16 %v290
    %v980 = vunpack.c.h.b16 %v290
    %v981 = vunpack.c.l.b16 %v291
    %v982 = vunpack.c.h.b16 %v291
    %v983 = vunpack.c.l.b16 %v292
    %v984 = vunpack.c.h.b16 %v292
    %v985 = vunpack.c.l.b16 %v293
    %v986 = vunpack.c.h.b16 %v293
    %v987 = vunpack.c.l.b16 %v294
    %v988 = vunpack.c.h.b16 %v294
    %v989 = vunpack.c.l.b16 %v295
    %v990 = vunpack.c.h.b16 %v295
    %v991 = vunpack.c.l.b16 %v296
    %v992 = vunpack.c.h.b16 %v296
    %v993 = vunpack.c.l.b16 %v297
    %v994 = vunpack.c.h.b16 %v297
    %v995 = vunpack.c.l.b16 %v298
    %v996 = vunpack.c.h.b16 %v298
    %v997 = vunpack.c.l.b16 %v299
    %v998 = vunpack.c.h.b16 %v299
    %v999 = vunpack.c.l.b16 %v300
    %v1000 = vunpack.c.h.b16 %v300
    %v1001 = vunpack.c.l.b16 %v301
    %v1002 = vunpack.c.h.b16 %v301
    %v1003 = vunpack.c.l.b16 %v302
    %v1004 = vunpack.c.h.b16 %v302
    %v1005 = vunpack.c.l.b16 %v303
    %v1006 = vunpack.c.h.b16 %v303
    %v1007 = vunpack.c.l.b16 %v304
    %v1008 = vunpack.c.h.b16 %v304
    %v1009 = vunpack.c.l.b16 %v305
    %v1010 = vunpack.c.h.b16 %v305
    %v1011 = vunpack.c.l.b16 %v306
    %v1012 = vunpack.c.h.b16 %v306
    %v1013 = vunpack.c.l.b16 %v307
    %v1014 = vunpack.c.h.b16 %v307
    %v1015 = vunpack.c.l.b16 %v308
    %v1016 = vunpack.c.h.b16 %v308
    %v1017 = vunpack.c.l.b16 %v309
    %v1018 = vunpack.c.h.b16 %v309
    %v1019 = vunpack.c.l.b16 %v310
    %v1020 = vunpack.c.h.b16 %v310
    %v1021 = vunpack.c.l.b16 %v311
    %v1022 = vunpack.c.h.b16 %v311
    %v1023 = vunpack.c.l.b16 %v312
    %v1024 = vunpack.c.h.b16 %v312
    %v1025 = vunpack.c.l.b16 %v313
    %v1026 = vunpack.c.h.b16 %v313
    %v1027 = vunpack.c.l.b16 %v314
    %v1028 = vunpack.c.h.b16 %v314
    %v1029 = vunpack.c.l.b16 %v315
    %v1030 = vunpack.c.h.b16 %v315
    %v1031 = vunpack.c.l.b16 %v316
    %v1032 = vunpack.c.h.b16 %v316
    %v1033 = vunpack.c.l.b16 %v317
    %v1034 = vunpack.c.h.b16 %v317
    %v1035 = vunpack.c.l.b16 %v318
    %v1036 = vunpack.c.h.b16 %v318
    %v1037 = vunpack.c.l.b16 %v319
    %v1038 = vunpack.c.h.b16 %v319
    %v1039 = vunpack.c.l.b16 %v320
    %v1040 = vunpack.c.h.b16 %v320
    %v1041 = vunpack.c.l.b16 %v321
    %v1042 = vunpack.c.h.b16 %v321
    %v1043 = vunpack.c.l.b16 %v322
    %v1044 = vunpack.c.h.b16 %v322
    %v1045 = vunpack.c.l.b16 %v323
    %v1046 = vunpack.c.h.b16 %v323
    %v1047 = vunpack.c.l.b16 %v324
    %v1048 = vunpack.c.h.b16 %v324
    %v1049 = vunpack.c.l.b16 %v325
    %v1050 = vunpack.c.h.b16 %v325
    %v1051 = vunpack.c.l.b16 %v326
    %v1052 = vunpack.c.h.b16 %v326
    %v1053 = vunpack.c.l.b16 %v327
    %v1054 = vunpack.c.h.b16 %v327
    %v1055 = vunpack.c.l.b16 %v328
    %v1056 = vunpack.c.h.b16 %v328
    %v1057 = vunpack.c.l.b16 %v329
    %v1058 = vunpack.c.h.b16 %v329
    %v1059 = vunpack.c.l.b16 %v330
    %v1060 = vunpack.c.h.b16 %v330
    %v1061 = vunpack.c.l.b16 %v331
    %v1062 = vunpack.c.h.b16 %v331
    %v1063 = vunpack.c.l.b16 %v332
    %v1064 = vunpack.c.h.b16 %v332
    %v1065 = vunpack.c.l.b16 %v333
    %v1066 = vunpack.c.h.b16 %v333
    %v1067 = vunpack.c.l.b16 %v334
    %v1068 = vunpack.c.h.b16 %v334
    %v1069 = vunpack.c.l.b16 %v335
    %v1070 = vunpack.c.h.b16 %v335
    %v1071 = vunpack.c.l.b16 %v336
    %v1072 = vunpack.c.h.b16 %v336
    %v1073 = vunpack.c.l.b16 %v337
    %v1074 = vunpack.c.h.b16 %v337
    %v1075 = vunpack.c.l.b16 %v338
    %v1076 = vunpack.c.h.b16 %v338
    %v1077 = vunpack.c.l.b16 %v339
    %v1078 = vunpack.c.h.b16 %v339
    %v1079 = vunpack.c.l.b16 %v340
    %v1080 = vunpack.c.h.b16 %v340
    %v1081 = vunpack.c.l.b16 %v341
    %v1082 = vunpack.c.h.b16 %v341
    %v1083 = vunpack.c.l.b16 %v342
    %v1084 = vunpack.c.h.b16 %v342
    %v1085 = vunpack.c.l.b16 %v343
    %v1086 = vunpack.c.h.b16 %v343
    %v1087 = vunpack.c.l.b16 %v344
    %v1088 = vunpack.c.h.b16 %v344
    %v1089 = vunpack.c.l.b16 %v345
    %v1090 = vunpack.c.h.b16 %v345
    %v1091 = vunpack.c.l.b16 %v346
    %v1092 = vunpack.c.h.b16 %v346
    %v1093 = vunpack.c.l.b16 %v347
    %v1094 = vunpack.c.h.b16 %v347
    %v1095 = vunpack.c.l.b16 %v348
    %v1096 = vunpack.c.h.b16 %v348
    %v1097 = vunpack.c.l.b16 %v349
    %v1098 = vunpack.c.h.b16 %v349
    %v1099 = vunpack.c.l.b16 %v350
    %v1100 = vunpack.c.h.b16 %v350
    %v1101 = vunpack.c.l.b16 %v351
    %v1102 = vunpack.c.h.b16 %v351
    %v1103 = vunpack.c.l.b16 %v352
    %v1104 = vunpack.c.h.b16 %v352
    %v1105 = vunpack.c.l.b16 %v353
    %v1106 = vunpack.c.h.b16 %v353
    %v1107 = vunpack.c.l.b16 %v354
    %v1108 = vunpack.c.h.b16 %v354
    %v1109 = vunpack.c.l.b16 %v355
    %v1110 = vunpack.c.h.b16 %v355
    %v1111 = vunpack.c.l.b16 %v356
    %v1112 = vunpack.c.h.b16 %v356
    %v1113 = vunpack.c.l.b16 %v357
    %v1114 = vunpack.c.h.b16 %v357
    %v1115 = vunpack.c.l.b16 %v358
    %v1116 = vunpack.c.h.b16 %v358
    %v1117 = vunpack.c.l.b16 %v359
    %v1118 = vunpack.c.h.b16 %v359
    %v1119 = vunpack.c.l.b16 %v360
    %v1120 = vunpack.c.h.b16 %v360
    %v1121 = vunpack.c.l.b16 %v361
    %v1122 = vunpack.c.h.b16 %v361
    %v1123 = vunpack.c.l.b16 %v362
    %v1124 = vunpack.c.h.b16 %v362
    %v1125 = vunpack.c.l.b16 %v363
    %v1126 = vunpack.c.h.b16 %v363
    %v1127 = vunpack.c.l.b16 %v364
    %v1128 = vunpack.c.h.b16 %v364
    %v1129 = vunpack.c.l.b16 %v365
    %v1130 = vunpack.c.h.b16 %v365
    %v1131 = vunpack.c.l.b16 %v366
    %v1132 = vunpack.c.h.b16 %v366
    %v1133 = vunpack.c.l.b16 %v367
    %v1134 = vunpack.c.h.b16 %v367
    %v1135 = vunpack.c.l.b16 %v368
    %v1136 = vunpack.c.h.b16 %v368
    %v1137 = vunpack.c.l.b16 %v369
    %v1138 = vunpack.c.h.b16 %v369
    %v1139 = vunpack.c.l.b16 %v370
    %v1140 = vunpack.c.h.b16 %v370
    %v1141 = vunpack.c.l.b16 %v371
    %v1142 = vunpack.c.h.b16 %v371
    %v1143 = vunpack.c.l.b16 %v372
    %v1144 = vunpack.c.h.b16 %v372
    %v1145 = vunpack.c.l.b16 %v373
    %v1146 = vunpack.c.h.b16 %v373
    %v1147 = vunpack.c.l.b16 %v374
    %v1148 = vunpack.c.h.b16 %v374
    %v1149 = vunpack.c.l.b16 %v375
    %v1150 = vunpack.c.h.b16 %v375
    %v1151 = vunpack.c.l.b16 %v376
    %v1152 = vunpack.c.h.b16 %v376
    %v1153 = vunpack.c.l.b16 %v377
    %v1154 = vunpack.c.h.b16 %v377
    %v1155 = vunpack.c.l.b16 %v378
    %v1156 = vunpack.c.h.b16 %v378
    %v1157 = vunpack.c.l.b16 %v379
    %v1158 = vunpack.c.h.b16 %v379
    %v1159 = vunpack.c.l.b16 %v380
    %v1160 = vunpack.c.h.b16 %v380
    %v1161 = vunpack.c.l.b16 %v381
    %v1162 = vunpack.c.h.b16 %v381
    %v1163 = vunpack.c.l.b16 %v382
    %v1164 = vunpack.c.h.b16 %v382
    %v1165 = vunpack.c.l.b16 %v383
    %v1166 = vunpack.c.h.b16 %v383
    %v1167 = vunpack.c.l.b16 %v384
    %v1168 = vunpack.c.h.b16 %v384
    %v1169 = vunpack.c.l.b16 %v385
    %v1170 = vunpack.c.h.b16 %v385
    %v1171 = vunpack.c.l.b16 %v386
    %v1172 = vunpack.c.h.b16 %v386
    %v1173 = vunpack.c.l.b16 %v387
    %v1174 = vunpack.c.h.b16 %v387
    %v1175 = vunpack.c.l.b16 %v388
    %v1176 = vunpack.c.h.b16 %v388
    %v1177 = vunpack.c.l.b16 %v389
    %v1178 = vunpack.c.h.b16 %v389
    %v1179 = vunpack.c.l.b16 %v390
    %v1180 = vunpack.c.h.b16 %v390
    %v1181 = vpack.c.b16 %v673, %v669
    %v1182 = vpack.c.b16 %v674, %v670
    %v1183 = vpack.c.b16 %v675, %v671
    %v1184 = vpack.c.b16 %v676, %v672
    %v1185 = vpack.c.b16 %v681, %v677
    %v1186 = vpack.c.b16 %v682, %v678
    %v1187 = vpack.c.b16 %v683, %v679
    %v1188 = vpack.c.b16 %v684, %v680
    %v1189 = vpack.c.b16 %v689, %v685
    %v1190 = vpack.c.b16 %v690, %v686
    %v1191 = vpack.c.b16 %v691, %v687
    %v1192 = vpack.c.b16 %v692, %v688
    %v1193 = vpack.c.b16 %v697, %v693
    %v1194 = vpack.c.b16 %v698, %v694
    %v1195 = vpack.c.b16 %v699, %v695
    %v1196 = vpack.c.b16 %v700, %v696
    %v1197 = vpack.c.b16 %v705, %v701
    %v1198 = vpack.c.b16 %v706, %v702
    %v1199 = vpack.c.b16 %v707, %v703
    %v1200 = vpack.c.b16 %v708, %v704
    %v1201 = vpack.c.b16 %v713, %v709
    %v1202 = vpack.c.b16 %v714, %v710
    %v1203 = vpack.c.b16 %v715, %v711
    %v1204 = vpack.c.b16 %v716, %v712
    %v1205 = vpack.c.b16 %v721, %v717
    %v1206 = vpack.c.b16 %v722, %v718
    %v1207 = vpack.c.b16 %v723, %v719
    %v1208 = vpack.c.b16 %v724, %v720
    %v1209 = vpack.c.b16 %v729, %v725
    %v1210 = vpack.c.b16 %v730, %v726
    %v1211 = vpack.c.b16 %v731, %v727
    %v1212 = vpack.c.b16 %v732, %v728
    %v1213 = vpack.c.b16 %v737, %v733
    %v1214 = vpack.c.b16 %v738, %v734
    %v1215 = vpack.c.b16 %v739, %v735
    %v1216 = vpack.c.b16 %v740, %v736
    %v1217 = vpack.c.b16 %v745, %v741
    %v1218 = vpack.c.b16 %v746, %v742
    %v1219 = vpack.c.b16 %v747, %v743
    %v1220 = vpack.c.b16 %v748, %v744
    %v1221 = vpack.c.b16 %v753, %v749
    %v1222 = vpack.c.b16 %v754, %v750
    %v1223 = vpack.c.b16 %v755, %v751
    %v1224 = vpack.c.b16 %v756, %v752
    %v1225 = vpack.c.b16 %v761, %v757
    %v1226 = vpack.c.b16 %v762, %v758
    %v1227 = vpack.c.b16 %v763, %v759
    %v1228 = vpack.c.b16 %v764, %v760
    %v1229 = vpack.c.b16 %v769, %v765
    %v1230 = vpack.c.b16 %v770, %v766
    %v1231 = vpack.c.b16 %v771, %v767
    %v1232 = vpack.c.b16 %v772, %v768
    %v1233 = vpack.c.b16 %v777, %v773
    %v1234 = vpack.c.b16 %v778, %v774
    %v1235 = vpack.c.b16 %v779, %v775
    %v1236 = vpack.c.b16 %v780, %v776
    %v1237 = vpack.c.b16 %v785, %v781
    %v1238 = vpack.c.b16 %v786, %v782
    %v1239 = vpack.c.b16 %v787, %v783
    %v1240 = vpack.c.b16 %v788, %v784
    %v1241 = vpack.c.b16 %v793, %v789
    %v1242 = vpack.c.b16 %v794, %v790
    %v1243 = vpack.c.b16 %v795, %v791
    %v1244 = vpack.c.b16 %v796, %v792
    %v1245 = vpack.c.b16 %v801, %v797
    %v1246 = vpack.c.b16 %v802, %v798
    %v1247 = vpack.c.b16 %v803, %v799
    %v1248 = vpack.c.b16 %v804, %v800
    %v1249 = vpack.c.b16 %v809, %v805
    %v1250 = vpack.c.b16 %v810, %v806
    %v1251 = vpack.c.b16 %v811, %v807
    %v1252 = vpack.c.b16 %v812, %v808
    %v1253 = vpack.c.b16 %v817, %v813
    %v1254 = vpack.c.b16 %v818, %v814
    %v1255 = vpack.c.b16 %v819, %v815
    %v1256 = vpack.c.b16 %v820, %v816
    %v1257 = vpack.c.b16 %v825, %v821
    %v1258 = vpack.c.b16 %v826, %v822
    %v1259 = vpack.c.b16 %v827, %v823
    %v1260 = vpack.c.b16 %v828, %v824
    %v1261 = vpack.c.b16 %v833, %v829
    %v1262 = vpack.c.b16 %v834, %v830
    %v1263 = vpack.c.b16 %v835, %v831
    %v1264 = vpack.c.b16 %v836, %v832
    %v1265 = vpack.c.b16 %v841, %v837
    %v1266 = vpack.c.b16 %v842, %v838
    %v1267 = vpack.c.b16 %v843, %v839
    %v1268 = vpack.c.b16 %v844, %v840
    %v1269 = vpack.c.b16 %v849, %v845
    %v1270 = vpack.c.b16 %v850, %v846
    %v1271 = vpack.c.b16 %v851, %v847
    %v1272 = vpack.c.b16 %v852, %v848
    %v1273 = vpack.c.b16 %v857, %v853
    %v1274 = vpack.c.b16 %v858, %v854
    %v1275 = vpack.c.b16 %v859, %v855
    %v1276 = vpack.c.b16 %v860, %v856
    %v1277 = vpack.c.b16 %v865, %v861
    %v1278 = vpack.c.b16 %v866, %v862
    %v1279 = vpack.c.b16 %v867, %v863
    %v1280 = vpack.c.b16 %v868, %v864
    %v1281 = vpack.c.b16 %v873, %v869
    %v1282 = vpack.c.b16 %v874, %v870
    %v1283 = vpack.c.b16 %v875, %v871
    %v1284 = vpack.c.b16 %v876, %v872
    %v1285 = vpack.c.b16 %v881, %v877
    %v1286 = vpack.c.b16 %v882, %v878
    %v1287 = vpack.c.b16 %v883, %v879
    %v1288 = vpack.c.b16 %v884, %v880
    %v1289 = vpack.c.b16 %v889, %v885
    %v1290 = vpack.c.b16 %v890, %v886
    %v1291 = vpack.c.b16 %v891, %v887
    %v1292 = vpack.c.b16 %v892, %v888
    %v1293 = vpack.c.b16 %v897, %v893
    %v1294 = vpack.c.b16 %v898, %v894
    %v1295 = vpack.c.b16 %v899, %v895
    %v1296 = vpack.c.b16 %v900, %v896
    %v1297 = vpack.c.b16 %v905, %v901
    %v1298 = vpack.c.b16 %v906, %v902
    %v1299 = vpack.c.b16 %v907, %v903
    %v1300 = vpack.c.b16 %v908, %v904
    %v1301 = vpack.c.b16 %v913, %v909
    %v1302 = vpack.c.b16 %v914, %v910
    %v1303 = vpack.c.b16 %v915, %v911
    %v1304 = vpack.c.b16 %v916, %v912
    %v1305 = vpack.c.b16 %v921, %v917
    %v1306 = vpack.c.b16 %v922, %v918
    %v1307 = vpack.c.b16 %v923, %v919
    %v1308 = vpack.c.b16 %v924, %v920
    %v1309 = vpack.c.b16 %v929, %v925
    %v1310 = vpack.c.b16 %v930, %v926
    %v1311 = vpack.c.b16 %v931, %v927
    %v1312 = vpack.c.b16 %v932, %v928
    %v1313 = vpack.c.b16 %v937, %v933
    %v1314 = vpack.c.b16 %v938, %v934
    %v1315 = vpack.c.b16 %v939, %v935
    %v1316 = vpack.c.b16 %v940, %v936
    %v1317 = vpack.c.b16 %v945, %v941
    %v1318 = vpack.c.b16 %v946, %v942
    %v1319 = vpack.c.b16 %v947, %v943
    %v1320 = vpack.c.b16 %v948, %v944
    %v1321 = vpack.c.b16 %v953, %v949
    %v1322 = vpack.c.b16 %v954, %v950
    %v1323 = vpack.c.b16 %v955, %v951
    %v1324 = vpack.c.b16 %v956, %v952
    %v1325 = vpack.c.b16 %v961, %v957
    %v1326 = vpack.c.b16 %v962, %v958
    %v1327 = vpack.c.b16 %v963, %v959
    %v1328 = vpack.c.b16 %v964, %v960
    %v1329 = vpack.c.b16 %v969, %v965
    %v1330 = vpack.c.b16 %v970, %v966
    %v1331 = vpack.c.b16 %v971, %v967
    %v1332 = vpack.c.b16 %v972, %v968
    %v1333 = vpack.c.b16 %v977, %v973
    %v1334 = vpack.c.b16 %v978, %v974
    %v1335 = vpack.c.b16 %v979, %v975
    %v1336 = vpack.c.b16 %v980, %v976
    %v1337 = vpack.c.b16 %v985, %v981
    %v1338 = vpack.c.b16 %v986, %v982
    %v1339 = vpack.c.b16 %v987, %v983
    %v1340 = vpack.c.b16 %v988, %v984
    %v1341 = vpack.c.b16 %v993, %v989
    %v1342 = vpack.c.b16 %v994, %v990
    %v1343 = vpack.c.b16 %v995, %v991
    %v1344 = vpack.c.b16 %v996, %v992
    %v1345 = vpack.c.b16 %v1001, %v997
    %v1346 = vpack.c.b16 %v1002, %v998
    %v1347 = vpack.c.b16 %v1003, %v999
    %v1348 = vpack.c.b16 %v1004, %v1000
    %v1349 = vpack.c.b16 %v1009, %v1005
    %v1350 = vpack.c.b16 %v1010, %v1006
    %v1351 = vpack.c.b16 %v1011, %v1007
    %v1352 = vpack.c.b16 %v1012, %v1008
    %v1353 = vpack.c.b16 %v1017, %v1013
    %v1354 = vpack.c.b16 %v1018, %v1014
    %v1355 = vpack.c.b16 %v1019, %v1015
    %v1356 = vpack.c.b16 %v1020, %v1016
    %v1357 = vpack.c.b16 %v1025, %v1021
    %v1358 = vpack.c.b16 %v1026, %v1022
    %v1359 = vpack.c.b16 %v1027, %v1023
    %v1360 = vpack.c.b16 %v1028, %v1024
    %v1361 = vpack.c.b16 %v1033, %v1029
    %v1362 = vpack.c.b16 %v1034, %v1030
    %v1363 = vpack.c.b16 %v1035, %v1031
    %v1364 = vpack.c.b16 %v1036, %v1032
    %v1365 = vpack.c.b16 %v1041, %v1037
    %v1366 = vpack.c.b16 %v1042, %v1038
    %v1367 = vpack.c.b16 %v1043, %v1039
    %v1368 = vpack.c.b16 %v1044, %v1040
    %v1369 = vpack.c.b16 %v1049, %v1045
    %v1370 = vpack.c.b16 %v1050, %v1046
    %v1371 = vpack.c.b16 %v1051, %v1047
    %v1372 = vpack.c.b16 %v1052, %v1048
    %v1373 = vpack.c.b16 %v1057, %v1053
    %v1374 = vpack.c.b16 %v1058, %v1054
    %v1375 = vpack.c.b16 %v1059, %v1055
    %v1376 = vpack.c.b16 %v1060, %v1056
    %v1377 = vpack.c.b16 %v1065, %v1061
    %v1378 = vpack.c.b16 %v1066, %v1062
    %v1379 = vpack.c.b16 %v1067, %v1063
    %v1380 = vpack.c.b16 %v1068, %v1064
    %v1381 = vpack.c.b16 %v1073, %v1069
    %v1382 = vpack.c.b16 %v1074, %v1070
    %v1383 = vpack.c.b16 %v1075, %v1071
    %v1384 = vpack.c.b16 %v1076, %v1072
    %v1385 = vpack.c.b16 %v1081, %v1077
    %v1386 = vpack.c.b16 %v1082, %v1078
    %v1387 = vpack.c.b16 %v1083, %v1079
    %v1388 = vpack.c.b16 %v1084, %v1080
    %v1389 = vpack.c.b16 %v1089, %v1085
    %v1390 = vpack.c.b16 %v1090, %v1086
    %v1391 = vpack.c.b16 %v1091, %v1087
    %v1392 = vpack.c.b16 %v1092, %v1088
    %v1393 = vpack.c.b16 %v1097, %v1093
    %v1394 = vpack.c.b16 %v1098, %v1094
    %v1395 = vpack.c.b16 %v1099, %v1095
    %v1396 = vpack.c.b16 %v1100, %v1096
    %v1397 = vpack.c.b16 %v1105, %v1101
    %v1398 = vpack.c.b16 %v1106, %v1102
    %v1399 = vpack.c.b16 %v1107, %v1103
    %v1400 = vpack.c.b16 %v1108, %v1104
    %v1401 = vpack.c.b16 %v1113, %v1109
    %v1402 = vpack.c.b16 %v1114, %v1110
    %v1403 = vpack.c.b16 %v1115, %v1111
    %v1404 = vpack.c.b16 %v1116, %v1112
    %v1405 = vpack.c.b16 %v1121, %v1117
    %v1406 = vpack.c.b16 %v1122, %v1118
    %v1407 = vpack.c.b16 %v1123, %v1119
    %v1408 = vpack.c.b16 %v1124, %v1120
    %v1409 = vpack.c.b16 %v1129, %v1125
    %v1410 = vpack.c.b16 %v1130, %v1126
    %v1411 = vpack.c.b16 %v1131, %v1127
    %v1412 = vpack.c.b16 %v1132, %v1128
    %v1413 = vpack.c.b16 %v1137, %v1133
    %v1414 = vpack.c.b16 %v1138, %v1134
    %v1415 = vpack.c.b16 %v1139, %v1135
    %v1416 = vpack.c.b16 %v1140, %v1136
    %v1417 = vpack.c.b16 %v1145, %v1141
    %v1418 = vpack.c.b16 %v1146, %v1142
    %v1419 = vpack.c.b16 %v1147, %v1143
    %v1420 = vpack.c.b16 %v1148, %v1144
    %v1421 = vpack.c.b16 %v1153, %v1149
    %v1422 = vpack.c.b16 %v1154, %v1150
    %v1423 = vpack.c.b16 %v1155, %v1151
    %v1424 = vpack.c.b16 %v1156, %v1152
    %v1425 = vpack.c.b16 %v1161, %v1157
    %v1426 = vpack.c.b16 %v1162, %v1158
    %v1427 = vpack.c.b16 %v1163, %v1159
    %v1428 = vpack.c.b16 %v1164, %v1160
    %v1429 = vpack.c.b16 %v1169, %v1165
    %v1430 = vpack.c.b16 %v1170, %v1166
    %v1431 = vpack.c.b16 %v1171, %v1167
    %v1432 = vpack.c.b16 %v1172, %v1168
    %v1433 = vpack.c.b16 %v1177, %v1173
    %v1434 = vpack.c.b16 %v1178, %v1174
    %v1435 = vpack.c.b16 %v1179, %v1175
    %v1436 = vpack.c.b16 %v1180, %v1176
    %1693 = vmatprep.subr.bf16.mxu0 %v1182
    %1694 = vmatpush1.bf16.msra.mxu0 %v1181
    %1695 = vmatprep.subr.bf16.mxu0 %v1186
    %1696 = vmatpush1.bf16.msra.mxu0 %v1185
    %1697 = vmatprep.subr.bf16.mxu0 %v1190
    %1698 = vmatpush1.bf16.msra.mxu0 %v1189
    %1699 = vmatprep.subr.bf16.mxu0 %v1194
    %1700 = vmatpush1.bf16.msra.mxu0 %v1193
    %1701 = vmatprep.subr.bf16.mxu0 %v1198
    %1702 = vmatpush1.bf16.msra.mxu0 %v1197
    %1703 = vmatprep.subr.bf16.mxu0 %v1202
    %1704 = vmatpush1.bf16.msra.mxu0 %v1201
    %1705 = vmatprep.subr.bf16.mxu0 %v1206
    %1706 = vmatpush1.bf16.msra.mxu0 %v1205
    %1707 = vmatprep.subr.bf16.mxu0 %v1210
    %1708 = vmatpush1.bf16.msra.mxu0 %v1209
    %1709 = vmatprep.subr.bf16.mxu0 %v1214
    %1710 = vmatpush1.bf16.msra.mxu0 %v1213
    %1711 = vmatprep.subr.bf16.mxu0 %v1218
    %1712 = vmatpush1.bf16.msra.mxu0 %v1217
    %1713 = vmatprep.subr.bf16.mxu0 %v1222
    %1714 = vmatpush1.bf16.msra.mxu0 %v1221
    %1715 = vmatprep.subr.bf16.mxu0 %v1226
    %1716 = vmatpush1.bf16.msra.mxu0 %v1225
    %1717 = vmatprep.subr.bf16.mxu0 %v1230
    %1718 = vmatpush1.bf16.msra.mxu0 %v1229
    %1719 = vmatprep.subr.bf16.mxu0 %v1234
    %1720 = vmatpush1.bf16.msra.mxu0 %v1233
    %1721 = vmatprep.subr.bf16.mxu0 %v1238
    %1722 = vmatpush1.bf16.msra.mxu0 %v1237
    %1723 = vmatprep.subr.bf16.mxu0 %v1242
    %1724 = vmatpush1.bf16.msra.mxu0 %v1241
    %1725 = vmatprep.mubr.bf16.mxu0 %v128
    %1726 = vmatmul.mubr.bf16.gmra.mrb[0].mxu0 %v127
    %v1727 = vpop.f32.mrb[0].mxu0
    %v1728 = vadd.f32 %v396, %v1727
    %v1729 = vpop.f32.mrb[0].mxu0
    %v1730 = vadd.f32 %v400, %v1729
    %v1731 = vpop.f32.mrb[0].mxu0
    %v1732 = vpop.f32.mrb[0].mxu0
    %1733 = vdwg.mxu0
    %1734 = vmatprep.subr.bf16.mxu0 %v1246
    %1735 = vmatpush1.bf16.msra.mxu0 %v1245
    %1736 = vmatprep.subr.bf16.mxu0 %v1250
    %1737 = vmatpush1.bf16.msra.mxu0 %v1249
    %1738 = vmatprep.subr.bf16.mxu0 %v1254
    %1739 = vmatpush1.bf16.msra.mxu0 %v1253
    %1740 = vmatprep.subr.bf16.mxu0 %v1258
    %1741 = vmatpush1.bf16.msra.mxu0 %v1257
    %1742 = vmatprep.subr.bf16.mxu0 %v1262
    %1743 = vmatpush1.bf16.msra.mxu0 %v1261
    %1744 = vmatprep.subr.bf16.mxu0 %v1266
    %1745 = vmatpush1.bf16.msra.mxu0 %v1265
    %1746 = vmatprep.subr.bf16.mxu0 %v1270
    %1747 = vmatpush1.bf16.msra.mxu0 %v1269
    %1748 = vmatprep.subr.bf16.mxu0 %v1274
    %1749 = vmatpush1.bf16.msra.mxu0 %v1273
    %1750 = vmatprep.subr.bf16.mxu0 %v1278
    %1751 = vmatpush1.bf16.msra.mxu0 %v1277
    %1752 = vmatprep.subr.bf16.mxu0 %v1282
    %1753 = vmatpush1.bf16.msra.mxu0 %v1281
    %1754 = vmatprep.subr.bf16.mxu0 %v1286
    %1755 = vmatpush1.bf16.msra.mxu0 %v1285
    %1756 = vmatprep.subr.bf16.mxu0 %v1290
    %1757 = vmatpush1.bf16.msra.mxu0 %v1289
    %1758 = vmatprep.subr.bf16.mxu0 %v1294
    %1759 = vmatpush1.bf16.msra.mxu0 %v1293
    %1760 = vmatprep.subr.bf16.mxu0 %v1298
    %1761 = vmatpush1.bf16.msra.mxu0 %v1297
    %1762 = vmatprep.subr.bf16.mxu0 %v1302
    %1763 = vmatpush1.bf16.msra.mxu0 %v1301
    %1764 = vmatprep.subr.bf16.mxu0 %v1306
    %1765 = vmatpush1.bf16.msra.mxu0 %v1305
    %1766 = vmatprep.mubr.bf16.mxu0 %v130
    %1767 = vmatmul.mubr.bf16.gmra.mrb[0].mxu0 %v129
    %v1768 = vpop.f32.mrb[0].mxu0
    %v1769 = vadd.f32 %v1728, %v1768
    %v1770 = vpop.f32.mrb[0].mxu0
    %v1771 = vadd.f32 %v1730, %v1770
    %v1772 = vpop.f32.mrb[0].mxu0
    %v1773 = vpop.f32.mrb[0].mxu0
    %1774 = vdwg.mxu0
    %1775 = vmatprep.subr.bf16.mxu0 %v1310
    %1776 = vmatpush1.bf16.msra.mxu0 %v1309
    %1777 = vmatprep.subr.bf16.mxu0 %v1314
    %1778 = vmatpush1.bf16.msra.mxu0 %v1313
    %1779 = vmatprep.subr.bf16.mxu0 %v1318
    %1780 = vmatpush1.bf16.msra.mxu0 %v1317
    %1781 = vmatprep.subr.bf16.mxu0 %v1322
    %1782 = vmatpush1.bf16.msra.mxu0 %v1321
    %1783 = vmatprep.subr.bf16.mxu0 %v1326
    %1784 = vmatpush1.bf16.msra.mxu0 %v1325
    %1785 = vmatprep.subr.bf16.mxu0 %v1330
    %1786 = vmatpush1.bf16.msra.mxu0 %v1329
    %1787 = vmatprep.subr.bf16.mxu0 %v1334
    %1788 = vmatpush1.bf16.msra.mxu0 %v1333
    %1789 = vmatprep.subr.bf16.mxu0 %v1338
    %1790 = vmatpush1.bf16.msra.mxu0 %v1337
    %1791 = vmatprep.subr.bf16.mxu0 %v1342
    %1792 = vmatpush1.bf16.msra.mxu0 %v1341
    %1793 = vmatprep.subr.bf16.mxu0 %v1346
    %1794 = vmatpush1.bf16.msra.mxu0 %v1345
    %1795 = vmatprep.subr.bf16.mxu0 %v1350
    %1796 = vmatpush1.bf16.msra.mxu0 %v1349
    %1797 = vmatprep.subr.bf16.mxu0 %v1354
    %1798 = vmatpush1.bf16.msra.mxu0 %v1353
    %1799 = vmatprep.subr.bf16.mxu0 %v1358
    %1800 = vmatpush1.bf16.msra.mxu0 %v1357
    %1801 = vmatprep.subr.bf16.mxu0 %v1362
    %1802 = vmatpush1.bf16.msra.mxu0 %v1361
    %1803 = vmatprep.subr.bf16.mxu0 %v1366
    %1804 = vmatpush1.bf16.msra.mxu0 %v1365
    %1805 = vmatprep.subr.bf16.mxu0 %v1370
    %1806 = vmatpush1.bf16.msra.mxu0 %v1369
    %1807 = vmatprep.mubr.bf16.mxu0 %v132
    %1808 = vmatmul.mubr.bf16.gmra.mrb[0].mxu0 %v131
    %v1809 = vpop.f32.mrb[0].mxu0
    %v1810 = vadd.f32 %v1769, %v1809
    %v1811 = vpop.f32.mrb[0].mxu0
    %v1812 = vadd.f32 %v1771, %v1811
    %v1813 = vpop.f32.mrb[0].mxu0
    %v1814 = vpop.f32.mrb[0].mxu0
    %1815 = vdwg.mxu0
    %1816 = vmatprep.subr.bf16.mxu0 %v1374
    %1817 = vmatpush1.bf16.msra.mxu0 %v1373
    %1818 = vmatprep.subr.bf16.mxu0 %v1378
    %1819 = vmatpush1.bf16.msra.mxu0 %v1377
    %1820 = vmatprep.subr.bf16.mxu0 %v1382
    %1821 = vmatpush1.bf16.msra.mxu0 %v1381
    %1822 = vmatprep.subr.bf16.mxu0 %v1386
    %1823 = vmatpush1.bf16.msra.mxu0 %v1385
    %1824 = vmatprep.subr.bf16.mxu0 %v1390
    %1825 = vmatpush1.bf16.msra.mxu0 %v1389
    %1826 = vmatprep.subr.bf16.mxu0 %v1394
    %1827 = vmatpush1.bf16.msra.mxu0 %v1393
    %1828 = vmatprep.subr.bf16.mxu0 %v1398
    %1829 = vmatpush1.bf16.msra.mxu0 %v1397
    %1830 = vmatprep.subr.bf16.mxu0 %v1402
    %1831 = vmatpush1.bf16.msra.mxu0 %v1401
    %1832 = vmatprep.subr.bf16.mxu0 %v1406
    %1833 = vmatpush1.bf16.msra.mxu0 %v1405
    %1834 = vmatprep.subr.bf16.mxu0 %v1410
    %1835 = vmatpush1.bf16.msra.mxu0 %v1409
    %1836 = vmatprep.subr.bf16.mxu0 %v1414
    %1837 = vmatpush1.bf16.msra.mxu0 %v1413
    %1838 = vmatprep.subr.bf16.mxu0 %v1418
    %1839 = vmatpush1.bf16.msra.mxu0 %v1417
    %1840 = vmatprep.subr.bf16.mxu0 %v1422
    %1841 = vmatpush1.bf16.msra.mxu0 %v1421
    %1842 = vmatprep.subr.bf16.mxu0 %v1426
    %1843 = vmatpush1.bf16.msra.mxu0 %v1425
    %1844 = vmatprep.subr.bf16.mxu0 %v1430
    %1845 = vmatpush1.bf16.msra.mxu0 %v1429
    %1846 = vmatprep.subr.bf16.mxu0 %v1434
    %1847 = vmatpush1.bf16.msra.mxu0 %v1433
    %1848 = vmatprep.mubr.bf16.mxu0 %v134
    %1849 = vmatmul.mubr.bf16.gmra.mrb[0].mxu0 %v133
    %v1850 = vpop.f32.mrb[0].mxu0
    %v1851 = vadd.f32 %v1810, %v1850
    %v1852 = vpop.f32.mrb[0].mxu0
    %v1853 = vadd.f32 %v1812, %v1852
    %v1854 = vpop.f32.mrb[0].mxu0
    %v1855 = vpop.f32.mrb[0].mxu0
    %1856 = vdwg.mxu0
    %1857 = vmatprep.subr.bf16.mxu0 %v1184
    %1858 = vmatpush1.bf16.msra.mxu0 %v1183
    %1859 = vmatprep.subr.bf16.mxu0 %v1188
    %1860 = vmatpush1.bf16.msra.mxu0 %v1187
    %1861 = vmatprep.subr.bf16.mxu0 %v1192
    %1862 = vmatpush1.bf16.msra.mxu0 %v1191
    %1863 = vmatprep.subr.bf16.mxu0 %v1196
    %1864 = vmatpush1.bf16.msra.mxu0 %v1195
    %1865 = vmatprep.subr.bf16.mxu0 %v1200
    %1866 = vmatpush1.bf16.msra.mxu0 %v1199
    %1867 = vmatprep.subr.bf16.mxu0 %v1204
    %1868 = vmatpush1.bf16.msra.mxu0 %v1203
    %1869 = vmatprep.subr.bf16.mxu0 %v1208
    %1870 = vmatpush1.bf16.msra.mxu0 %v1207
    %1871 = vmatprep.subr.bf16.mxu0 %v1212
    %1872 = vmatpush1.bf16.msra.mxu0 %v1211
    %1873 = vmatprep.subr.bf16.mxu0 %v1216
    %1874 = vmatpush1.bf16.msra.mxu0 %v1215
    %1875 = vmatprep.subr.bf16.mxu0 %v1220
    %1876 = vmatpush1.bf16.msra.mxu0 %v1219
    %1877 = vmatprep.subr.bf16.mxu0 %v1224
    %1878 = vmatpush1.bf16.msra.mxu0 %v1223
    %1879 = vmatprep.subr.bf16.mxu0 %v1228
    %1880 = vmatpush1.bf16.msra.mxu0 %v1227
    %1881 = vmatprep.subr.bf16.mxu0 %v1232
    %1882 = vmatpush1.bf16.msra.mxu0 %v1231
    %1883 = vmatprep.subr.bf16.mxu0 %v1236
    %1884 = vmatpush1.bf16.msra.mxu0 %v1235
    %1885 = vmatprep.subr.bf16.mxu0 %v1240
    %1886 = vmatpush1.bf16.msra.mxu0 %v1239
    %1887 = vmatprep.subr.bf16.mxu0 %v1244
    %1888 = vmatpush1.bf16.msra.mxu0 %v1243
    %1889 = vmatprep.mubr.bf16.mxu0 %v128
    %1890 = vmatmul.mubr.bf16.gmra.mrb[0].mxu0 %v127
    %v1891 = vpop.f32.mrb[0].mxu0
    %v1892 = vadd.f32 %v404, %v1891
    %v1893 = vpop.f32.mrb[0].mxu0
    %v1894 = vadd.f32 %v408, %v1893
    %v1895 = vpop.f32.mrb[0].mxu0
    %v1896 = vpop.f32.mrb[0].mxu0
    %1897 = vdwg.mxu0
    %1898 = vmatprep.subr.bf16.mxu0 %v1248
    %1899 = vmatpush1.bf16.msra.mxu0 %v1247
    %1900 = vmatprep.subr.bf16.mxu0 %v1252
    %1901 = vmatpush1.bf16.msra.mxu0 %v1251
    %1902 = vmatprep.subr.bf16.mxu0 %v1256
    %1903 = vmatpush1.bf16.msra.mxu0 %v1255
    %1904 = vmatprep.subr.bf16.mxu0 %v1260
    %1905 = vmatpush1.bf16.msra.mxu0 %v1259
    %1906 = vmatprep.subr.bf16.mxu0 %v1264
    %1907 = vmatpush1.bf16.msra.mxu0 %v1263
    %1908 = vmatprep.subr.bf16.mxu0 %v1268
    %1909 = vmatpush1.bf16.msra.mxu0 %v1267
    %1910 = vmatprep.subr.bf16.mxu0 %v1272
    %1911 = vmatpush1.bf16.msra.mxu0 %v1271
    %1912 = vmatprep.subr.bf16.mxu0 %v1276
    %1913 = vmatpush1.bf16.msra.mxu0 %v1275
    %1914 = vmatprep.subr.bf16.mxu0 %v1280
    %1915 = vmatpush1.bf16.msra.mxu0 %v1279
    %1916 = vmatprep.subr.bf16.mxu0 %v1284
    %1917 = vmatpush1.bf16.msra.mxu0 %v1283
    %1918 = vmatprep.subr.bf16.mxu0 %v1288
    %1919 = vmatpush1.bf16.msra.mxu0 %v1287
    %1920 = vmatprep.subr.bf16.mxu0 %v1292
    %1921 = vmatpush1.bf16.msra.mxu0 %v1291
    %1922 = vmatprep.subr.bf16.mxu0 %v1296
    %1923 = vmatpush1.bf16.msra.mxu0 %v1295
    %1924 = vmatprep.subr.bf16.mxu0 %v1300
    %1925 = vmatpush1.bf16.msra.mxu0 %v1299
    %1926 = vmatprep.subr.bf16.mxu0 %v1304
    %1927 = vmatpush1.bf16.msra.mxu0 %v1303
    %1928 = vmatprep.subr.bf16.mxu0 %v1308
    %1929 = vmatpush1.bf16.msra.mxu0 %v1307
    %1930 = vmatprep.mubr.bf16.mxu0 %v130
    %1931 = vmatmul.mubr.bf16.gmra.mrb[0].mxu0 %v129
    %v1932 = vpop.f32.mrb[0].mxu0
    %v1933 = vadd.f32 %v1892, %v1932
    %v1934 = vpop.f32.mrb[0].mxu0
    %v1935 = vadd.f32 %v1894, %v1934
    %v1936 = vpop.f32.mrb[0].mxu0
    %v1937 = vpop.f32.mrb[0].mxu0
    %1938 = vdwg.mxu0
    %1939 = vmatprep.subr.bf16.mxu0 %v1312
    %1940 = vmatpush1.bf16.msra.mxu0 %v1311
    %1941 = vmatprep.subr.bf16.mxu0 %v1316
    %1942 = vmatpush1.bf16.msra.mxu0 %v1315
    %1943 = vmatprep.subr.bf16.mxu0 %v1320
    %1944 = vmatpush1.bf16.msra.mxu0 %v1319
    %1945 = vmatprep.subr.bf16.mxu0 %v1324
    %1946 = vmatpush1.bf16.msra.mxu0 %v1323
    %1947 = vmatprep.subr.bf16.mxu0 %v1328
    %1948 = vmatpush1.bf16.msra.mxu0 %v1327
    %1949 = vmatprep.subr.bf16.mxu0 %v1332
    %1950 = vmatpush1.bf16.msra.mxu0 %v1331
    %1951 = vmatprep.subr.bf16.mxu0 %v1336
    %1952 = vmatpush1.bf16.msra.mxu0 %v1335
    %1953 = vmatprep.subr.bf16.mxu0 %v1340
    %1954 = vmatpush1.bf16.msra.mxu0 %v1339
    %1955 = vmatprep.subr.bf16.mxu0 %v1344
    %1956 = vmatpush1.bf16.msra.mxu0 %v1343
    %1957 = vmatprep.subr.bf16.mxu0 %v1348
    %1958 = vmatpush1.bf16.msra.mxu0 %v1347
    %1959 = vmatprep.subr.bf16.mxu0 %v1352
    %1960 = vmatpush1.bf16.msra.mxu0 %v1351
    %1961 = vmatprep.subr.bf16.mxu0 %v1356
    %1962 = vmatpush1.bf16.msra.mxu0 %v1355
    %1963 = vmatprep.subr.bf16.mxu0 %v1360
    %1964 = vmatpush1.bf16.msra.mxu0 %v1359
    %1965 = vmatprep.subr.bf16.mxu0 %v1364
    %1966 = vmatpush1.bf16.msra.mxu0 %v1363
    %1967 = vmatprep.subr.bf16.mxu0 %v1368
    %1968 = vmatpush1.bf16.msra.mxu0 %v1367
    %1969 = vmatprep.subr.bf16.mxu0 %v1372
    %1970 = vmatpush1.bf16.msra.mxu0 %v1371
    %1971 = vmatprep.mubr.bf16.mxu0 %v132
    %1972 = vmatmul.mubr.bf16.gmra.mrb[0].mxu0 %v131
    %v1973 = vpop.f32.mrb[0].mxu0
    %v1974 = vadd.f32 %v1933, %v1973
    %v1975 = vpop.f32.mrb[0].mxu0
    %v1976 = vadd.f32 %v1935, %v1975
    %v1977 = vpop.f32.mrb[0].mxu0
    %v1978 = vpop.f32.mrb[0].mxu0
    %1979 = vdwg.mxu0
    %1980 = vmatprep.subr.bf16.mxu0 %v1376
    %1981 = vmatpush1.bf16.msra.mxu0 %v1375
    %1982 = vmatprep.subr.bf16.mxu0 %v1380
    %1983 = vmatpush1.bf16.msra.mxu0 %v1379
    %1984 = vmatprep.subr.bf16.mxu0 %v1384
    %1985 = vmatpush1.bf16.msra.mxu0 %v1383
    %1986 = vmatprep.subr.bf16.mxu0 %v1388
    %1987 = vmatpush1.bf16.msra.mxu0 %v1387
    %1988 = vmatprep.subr.bf16.mxu0 %v1392
    %1989 = vmatpush1.bf16.msra.mxu0 %v1391
    %1990 = vmatprep.subr.bf16.mxu0 %v1396
    %1991 = vmatpush1.bf16.msra.mxu0 %v1395
    %1992 = vmatprep.subr.bf16.mxu0 %v1400
    %1993 = vmatpush1.bf16.msra.mxu0 %v1399
    %1994 = vmatprep.subr.bf16.mxu0 %v1404
    %1995 = vmatpush1.bf16.msra.mxu0 %v1403
    %1996 = vmatprep.subr.bf16.mxu0 %v1408
    %1997 = vmatpush1.bf16.msra.mxu0 %v1407
    %1998 = vmatprep.subr.bf16.mxu0 %v1412
    %1999 = vmatpush1.bf16.msra.mxu0 %v1411
    %2000 = vmatprep.subr.bf16.mxu0 %v1416
    %2001 = vmatpush1.bf16.msra.mxu0 %v1415
    %2002 = vmatprep.subr.bf16.mxu0 %v1420
    %2003 = vmatpush1.bf16.msra.mxu0 %v1419
    %2004 = vmatprep.subr.bf16.mxu0 %v1424
    %2005 = vmatpush1.bf16.msra.mxu0 %v1423
    %2006 = vmatprep.subr.bf16.mxu0 %v1428
    %2007 = vmatpush1.bf16.msra.mxu0 %v1427
    %2008 = vmatprep.subr.bf16.mxu0 %v1432
    %2009 = vmatpush1.bf16.msra.mxu0 %v1431
    %2010 = vmatprep.subr.bf16.mxu0 %v1436
    %2011 = vmatpush1.bf16.msra.mxu0 %v1435
    %2012 = vmatprep.mubr.bf16.mxu0 %v134
    %2013 = vmatmul.mubr.bf16.gmra.mrb[0].mxu0 %v133
    %v2014 = vpop.f32.mrb[0].mxu0
    %v2015 = vadd.f32 %v1974, %v2014
    %v2016 = vpop.f32.mrb[0].mxu0
    %v2017 = vadd.f32 %v1976, %v2016
    %v2018 = vpop.f32.mrb[0].mxu0
    %v2019 = vpop.f32.mrb[0].mxu0
    %2020 = vdwg.mxu0
    %v2021 = vmax.f32 %v1851, 0.0
    %v2022 = vmax.f32 %v1853, 0.0
    %v2023 = vmax.f32 %v2015, 0.0
    %v2024 = vmax.f32 %v2017, 0.0
    %v2025 = vpack.c.bf16 %v2021, %v2021
    %v2026 = vpack.c.bf16 %v2022, %v2022
    %v2027 = vpack.c.bf16 %v2023, %v2023
    %v2028 = vpack.c.bf16 %v2024, %v2024
    %v2029 = vld [vmem:[#allocation7] sm:$0xff]
    %v2030 = vld [vmem:[#allocation7 + $0x8] sm:$0xff]
    %v2031 = vld [vmem:[#allocation7 + $0x10] sm:$0xff]
    %v2032 = vld [vmem:[#allocation7 + $0x18] sm:$0xff]
    %v2033 = vld [vmem:[#allocation7 + $0x20] sm:$0xff]
    %v2034 = vld [vmem:[#allocation7 + $0x28] sm:$0xff]
    %v2035 = vld [vmem:[#allocation7 + $0x30] sm:$0xff]
    %v2036 = vld [vmem:[#allocation7 + $0x38] sm:$0xff]
    %v2037 = vld [vmem:[#allocation7 + $0x40] sm:$0xff]
    %v2038 = vld [vmem:[#allocation7 + $0x48] sm:$0xff]
    %v2039 = vld [vmem:[#allocation7 + $0x50] sm:$0xff]
    %v2040 = vld [vmem:[#allocation7 + $0x58] sm:$0xff]
    %v2041 = vld [vmem:[#allocation7 + $0x60] sm:$0xff]
    %v2042 = vld [vmem:[#allocation7 + $0x68] sm:$0xff]
    %v2043 = vld [vmem:[#allocation7 + $0x70] sm:$0xff]
    %v2044 = vld [vmem:[#allocation7 + $0x78] sm:$0xff]
    %v2045 = vld [vmem:[#allocation7 + $0x80] sm:$0xff]
    %v2046 = vld [vmem:[#allocation7 + $0x88] sm:$0xff]
    %v2047 = vld [vmem:[#allocation7 + $0x90] sm:$0xff]
    %v2048 = vld [vmem:[#allocation7 + $0x98] sm:$0xff]
    %v2049 = vld [vmem:[#allocation7 + $0xa0] sm:$0xff]
    %v2050 = vld [vmem:[#allocation7 + $0xa8] sm:$0xff]
    %v2051 = vld [vmem:[#allocation7 + $0xb0] sm:$0xff]
    %v2052 = vld [vmem:[#allocation7 + $0xb8] sm:$0xff]
    %v2053 = vld [vmem:[#allocation7 + $0xc0] sm:$0xff]
    %v2054 = vld [vmem:[#allocation7 + $0xc8] sm:$0xff]
    %v2055 = vld [vmem:[#allocation7 + $0xd0] sm:$0xff]
    %v2056 = vld [vmem:[#allocation7 + $0xd8] sm:$0xff]
    %v2057 = vld [vmem:[#allocation7 + $0xe0] sm:$0xff]
    %v2058 = vld [vmem:[#allocation7 + $0xe8] sm:$0xff]
    %v2059 = vld [vmem:[#allocation7 + $0xf0] sm:$0xff]
    %v2060 = vld [vmem:[#allocation7 + $0xf8] sm:$0xff]
    %v2061 = vld [vmem:[#allocation7 + $0x100] sm:$0xff]
    %v2062 = vld [vmem:[#allocation7 + $0x108] sm:$0xff]
    %v2063 = vld [vmem:[#allocation7 + $0x110] sm:$0xff]
    %v2064 = vld [vmem:[#allocation7 + $0x118] sm:$0xff]
    %v2065 = vld [vmem:[#allocation7 + $0x120] sm:$0xff]
    %v2066 = vld [vmem:[#allocation7 + $0x128] sm:$0xff]
    %v2067 = vld [vmem:[#allocation7 + $0x130] sm:$0xff]
    %v2068 = vld [vmem:[#allocation7 + $0x138] sm:$0xff]
    %v2069 = vld [vmem:[#allocation7 + $0x140] sm:$0xff]
    %v2070 = vld [vmem:[#allocation7 + $0x148] sm:$0xff]
    %v2071 = vld [vmem:[#allocation7 + $0x150] sm:$0xff]
    %v2072 = vld [vmem:[#allocation7 + $0x158] sm:$0xff]
    %v2073 = vld [vmem:[#allocation7 + $0x160] sm:$0xff]
    %v2074 = vld [vmem:[#allocation7 + $0x168] sm:$0xff]
    %v2075 = vld [vmem:[#allocation7 + $0x170] sm:$0xff]
    %v2076 = vld [vmem:[#allocation7 + $0x178] sm:$0xff]
    %v2077 = vld [vmem:[#allocation7 + $0x180] sm:$0xff]
    %v2078 = vld [vmem:[#allocation7 + $0x188] sm:$0xff]
    %v2079 = vld [vmem:[#allocation7 + $0x190] sm:$0xff]
    %v2080 = vld [vmem:[#allocation7 + $0x198] sm:$0xff]
    %v2081 = vld [vmem:[#allocation7 + $0x1a0] sm:$0xff]
    %v2082 = vld [vmem:[#allocation7 + $0x1a8] sm:$0xff]
    %v2083 = vld [vmem:[#allocation7 + $0x1b0] sm:$0xff]
    %v2084 = vld [vmem:[#allocation7 + $0x1b8] sm:$0xff]
    %v2085 = vld [vmem:[#allocation7 + $0x1c0] sm:$0xff]
    %v2086 = vld [vmem:[#allocation7 + $0x1c8] sm:$0xff]
    %v2087 = vld [vmem:[#allocation7 + $0x1d0] sm:$0xff]
    %v2088 = vld [vmem:[#allocation7 + $0x1d8] sm:$0xff]
    %v2089 = vld [vmem:[#allocation7 + $0x1e0] sm:$0xff]
    %v2090 = vld [vmem:[#allocation7 + $0x1e8] sm:$0xff]
    %v2091 = vld [vmem:[#allocation7 + $0x1f0] sm:$0xff]
    %v2092 = vld [vmem:[#allocation7 + $0x1f8] sm:$0xff]
    %v2093 = vld [vmem:[%s4] sm:$0x3]
    %v2095 = vlaneseq
    %v2096 = vshrl.u32 %v2095, 7
    %v2097 = vsub.s32 0, %v2096
    %v2098 = vrot.slane %v2093, %v2097
    %v2099 = vlaneseq
    %v2100 = vshrl.u32 %v2099, 7
    %v2101 = vsub.s32 1, %v2100
    %v2102 = vrot.slane %v2093, %v2101
    %v2169 = vunpack.c.l.b16 %v2029
    %v2170 = vunpack.c.h.b16 %v2029
    %v2171 = vunpack.c.l.b16 %v2030
    %v2172 = vunpack.c.h.b16 %v2030
    %v2173 = vunpack.c.l.b16 %v2031
    %v2174 = vunpack.c.h.b16 %v2031
    %v2175 = vunpack.c.l.b16 %v2032
    %v2176 = vunpack.c.h.b16 %v2032
    %v2177 = vunpack.c.l.b16 %v2033
    %v2178 = vunpack.c.h.b16 %v2033
    %v2179 = vunpack.c.l.b16 %v2034
    %v2180 = vunpack.c.h.b16 %v2034
    %v2181 = vunpack.c.l.b16 %v2035
    %v2182 = vunpack.c.h.b16 %v2035
    %v2183 = vunpack.c.l.b16 %v2036
    %v2184 = vunpack.c.h.b16 %v2036
    %v2185 = vunpack.c.l.b16 %v2037
    %v2186 = vunpack.c.h.b16 %v2037
    %v2187 = vunpack.c.l.b16 %v2038
    %v2188 = vunpack.c.h.b16 %v2038
    %v2189 = vunpack.c.l.b16 %v2039
    %v2190 = vunpack.c.h.b16 %v2039
    %v2191 = vunpack.c.l.b16 %v2040
    %v2192 = vunpack.c.h.b16 %v2040
    %v2193 = vunpack.c.l.b16 %v2041
    %v2194 = vunpack.c.h.b16 %v2041
    %v2195 = vunpack.c.l.b16 %v2042
    %v2196 = vunpack.c.h.b16 %v2042
    %v2197 = vunpack.c.l.b16 %v2043
    %v2198 = vunpack.c.h.b16 %v2043
    %v2199 = vunpack.c.l.b16 %v2044
    %v2200 = vunpack.c.h.b16 %v2044
    %v2201 = vunpack.c.l.b16 %v2045
    %v2202 = vunpack.c.h.b16 %v2045
    %v2203 = vunpack.c.l.b16 %v2046
    %v2204 = vunpack.c.h.b16 %v2046
    %v2205 = vunpack.c.l.b16 %v2047
    %v2206 = vunpack.c.h.b16 %v2047
    %v2207 = vunpack.c.l.b16 %v2048
    %v2208 = vunpack.c.h.b16 %v2048
    %v2209 = vunpack.c.l.b16 %v2049
    %v2210 = vunpack.c.h.b16 %v2049
    %v2211 = vunpack.c.l.b16 %v2050
    %v2212 = vunpack.c.h.b16 %v2050
    %v2213 = vunpack.c.l.b16 %v2051
    %v2214 = vunpack.c.h.b16 %v2051
    %v2215 = vunpack.c.l.b16 %v2052
    %v2216 = vunpack.c.h.b16 %v2052
    %v2217 = vunpack.c.l.b16 %v2053
    %v2218 = vunpack.c.h.b16 %v2053
    %v2219 = vunpack.c.l.b16 %v2054
    %v2220 = vunpack.c.h.b16 %v2054
    %v2221 = vunpack.c.l.b16 %v2055
    %v2222 = vunpack.c.h.b16 %v2055
    %v2223 = vunpack.c.l.b16 %v2056
    %v2224 = vunpack.c.h.b16 %v2056
    %v2225 = vunpack.c.l.b16 %v2057
    %v2226 = vunpack.c.h.b16 %v2057
    %v2227 = vunpack.c.l.b16 %v2058
    %v2228 = vunpack.c.h.b16 %v2058
    %v2229 = vunpack.c.l.b16 %v2059
    %v2230 = vunpack.c.h.b16 %v2059
    %v2231 = vunpack.c.l.b16 %v2060
    %v2232 = vunpack.c.h.b16 %v2060
    %v2233 = vunpack.c.l.b16 %v2061
    %v2234 = vunpack.c.h.b16 %v2061
    %v2235 = vunpack.c.l.b16 %v2062
    %v2236 = vunpack.c.h.b16 %v2062
    %v2237 = vunpack.c.l.b16 %v2063
    %v2238 = vunpack.c.h.b16 %v2063
    %v2239 = vunpack.c.l.b16 %v2064
    %v2240 = vunpack.c.h.b16 %v2064
    %v2241 = vunpack.c.l.b16 %v2065
    %v2242 = vunpack.c.h.b16 %v2065
    %v2243 = vunpack.c.l.b16 %v2066
    %v2244 = vunpack.c.h.b16 %v2066
    %v2245 = vunpack.c.l.b16 %v2067
    %v2246 = vunpack.c.h.b16 %v2067
    %v2247 = vunpack.c.l.b16 %v2068
    %v2248 = vunpack.c.h.b16 %v2068
    %v2249 = vunpack.c.l.b16 %v2069
    %v2250 = vunpack.c.h.b16 %v2069
    %v2251 = vunpack.c.l.b16 %v2070
    %v2252 = vunpack.c.h.b16 %v2070
    %v2253 = vunpack.c.l.b16 %v2071
    %v2254 = vunpack.c.h.b16 %v2071
    %v2255 = vunpack.c.l.b16 %v2072
    %v2256 = vunpack.c.h.b16 %v2072
    %v2257 = vunpack.c.l.b16 %v2073
    %v2258 = vunpack.c.h.b16 %v2073
    %v2259 = vunpack.c.l.b16 %v2074
    %v2260 = vunpack.c.h.b16 %v2074
    %v2261 = vunpack.c.l.b16 %v2075
    %v2262 = vunpack.c.h.b16 %v2075
    %v2263 = vunpack.c.l.b16 %v2076
    %v2264 = vunpack.c.h.b16 %v2076
    %v2265 = vunpack.c.l.b16 %v2077
    %v2266 = vunpack.c.h.b16 %v2077
    %v2267 = vunpack.c.l.b16 %v2078
    %v2268 = vunpack.c.h.b16 %v2078
    %v2269 = vunpack.c.l.b16 %v2079
    %v2270 = vunpack.c.h.b16 %v2079
    %v2271 = vunpack.c.l.b16 %v2080
    %v2272 = vunpack.c.h.b16 %v2080
    %v2273 = vunpack.c.l.b16 %v2081
    %v2274 = vunpack.c.h.b16 %v2081
    %v2275 = vunpack.c.l.b16 %v2082
    %v2276 = vunpack.c.h.b16 %v2082
    %v2277 = vunpack.c.l.b16 %v2083
    %v2278 = vunpack.c.h.b16 %v2083
    %v2279 = vunpack.c.l.b16 %v2084
    %v2280 = vunpack.c.h.b16 %v2084
    %v2281 = vunpack.c.l.b16 %v2085
    %v2282 = vunpack.c.h.b16 %v2085
    %v2283 = vunpack.c.l.b16 %v2086
    %v2284 = vunpack.c.h.b16 %v2086
    %v2285 = vunpack.c.l.b16 %v2087
    %v2286 = vunpack.c.h.b16 %v2087
    %v2287 = vunpack.c.l.b16 %v2088
    %v2288 = vunpack.c.h.b16 %v2088
    %v2289 = vunpack.c.l.b16 %v2089
    %v2290 = vunpack.c.h.b16 %v2089
    %v2291 = vunpack.c.l.b16 %v2090
    %v2292 = vunpack.c.h.b16 %v2090
    %v2293 = vunpack.c.l.b16 %v2091
    %v2294 = vunpack.c.h.b16 %v2091
    %v2295 = vunpack.c.l.b16 %v2092
    %v2296 = vunpack.c.h.b16 %v2092
    %v2297 = vpack.c.b16 %v2171, %v2169
    %v2298 = vpack.c.b16 %v2172, %v2170
    %v2299 = vpack.c.b16 %v2175, %v2173
    %v2300 = vpack.c.b16 %v2176, %v2174
    %v2301 = vpack.c.b16 %v2179, %v2177
    %v2302 = vpack.c.b16 %v2180, %v2178
    %v2303 = vpack.c.b16 %v2183, %v2181
    %v2304 = vpack.c.b16 %v2184, %v2182
    %v2305 = vpack.c.b16 %v2187, %v2185
    %v2306 = vpack.c.b16 %v2188, %v2186
    %v2307 = vpack.c.b16 %v2191, %v2189
    %v2308 = vpack.c.b16 %v2192, %v2190
    %v2309 = vpack.c.b16 %v2195, %v2193
    %v2310 = vpack.c.b16 %v2196, %v2194
    %v2311 = vpack.c.b16 %v2199, %v2197
    %v2312 = vpack.c.b16 %v2200, %v2198
    %v2313 = vpack.c.b16 %v2203, %v2201
    %v2314 = vpack.c.b16 %v2204, %v2202
    %v2315 = vpack.c.b16 %v2207, %v2205
    %v2316 = vpack.c.b16 %v2208, %v2206
    %v2317 = vpack.c.b16 %v2211, %v2209
    %v2318 = vpack.c.b16 %v2212, %v2210
    %v2319 = vpack.c.b16 %v2215, %v2213
    %v2320 = vpack.c.b16 %v2216, %v2214
    %v2321 = vpack.c.b16 %v2219, %v2217
    %v2322 = vpack.c.b16 %v2220, %v2218
    %v2323 = vpack.c.b16 %v2223, %v2221
    %v2324 = vpack.c.b16 %v2224, %v2222
    %v2325 = vpack.c.b16 %v2227, %v2225
    %v2326 = vpack.c.b16 %v2228, %v2226
    %v2327 = vpack.c.b16 %v2231, %v2229
    %v2328 = vpack.c.b16 %v2232, %v2230
    %v2329 = vpack.c.b16 %v2235, %v2233
    %v2330 = vpack.c.b16 %v2236, %v2234
    %v2331 = vpack.c.b16 %v2239, %v2237
    %v2332 = vpack.c.b16 %v2240, %v2238
    %v2333 = vpack.c.b16 %v2243, %v2241
    %v2334 = vpack.c.b16 %v2244, %v2242
    %v2335 = vpack.c.b16 %v2247, %v2245
    %v2336 = vpack.c.b16 %v2248, %v2246
    %v2337 = vpack.c.b16 %v2251, %v2249
    %v2338 = vpack.c.b16 %v2252, %v2250
    %v2339 = vpack.c.b16 %v2255, %v2253
    %v2340 = vpack.c.b16 %v2256, %v2254
    %v2341 = vpack.c.b16 %v2259, %v2257
    %v2342 = vpack.c.b16 %v2260, %v2258
    %v2343 = vpack.c.b16 %v2263, %v2261
    %v2344 = vpack.c.b16 %v2264, %v2262
    %v2345 = vpack.c.b16 %v2267, %v2265
    %v2346 = vpack.c.b16 %v2268, %v2266
    %v2347 = vpack.c.b16 %v2271, %v2269
    %v2348 = vpack.c.b16 %v2272, %v2270
    %v2349 = vpack.c.b16 %v2275, %v2273
    %v2350 = vpack.c.b16 %v2276, %v2274
    %v2351 = vpack.c.b16 %v2279, %v2277
    %v2352 = vpack.c.b16 %v2280, %v2278
    %v2353 = vpack.c.b16 %v2283, %v2281
    %v2354 = vpack.c.b16 %v2284, %v2282
    %v2355 = vpack.c.b16 %v2287, %v2285
    %v2356 = vpack.c.b16 %v2288, %v2286
    %v2357 = vpack.c.b16 %v2291, %v2289
    %v2358 = vpack.c.b16 %v2292, %v2290
    %v2359 = vpack.c.b16 %v2295, %v2293
    %v2360 = vpack.c.b16 %v2296, %v2294
    %2425 = vmatprep.subr.bf16.mxu0 %v2298
    %2426 = vmatpush1.bf16.msra.mxu0 %v2297
    %2427 = vmatprep.subr.bf16.mxu0 %v2300
    %2428 = vmatpush1.bf16.msra.mxu0 %v2299
    %2429 = vmatprep.subr.bf16.mxu0 %v2302
    %2430 = vmatpush1.bf16.msra.mxu0 %v2301
    %2431 = vmatprep.subr.bf16.mxu0 %v2304
    %2432 = vmatpush1.bf16.msra.mxu0 %v2303
    %2433 = vmatprep.subr.bf16.mxu0 %v2306
    %2434 = vmatpush1.bf16.msra.mxu0 %v2305
    %2435 = vmatprep.subr.bf16.mxu0 %v2308
    %2436 = vmatpush1.bf16.msra.mxu0 %v2307
    %2437 = vmatprep.subr.bf16.mxu0 %v2310
    %2438 = vmatpush1.bf16.msra.mxu0 %v2309
    %2439 = vmatprep.subr.bf16.mxu0 %v2312
    %2440 = vmatpush1.bf16.msra.mxu0 %v2311
    %2441 = vmatprep.subr.bf16.mxu0 %v2314
    %2442 = vmatpush1.bf16.msra.mxu0 %v2313
    %2443 = vmatprep.subr.bf16.mxu0 %v2316
    %2444 = vmatpush1.bf16.msra.mxu0 %v2315
    %2445 = vmatprep.subr.bf16.mxu0 %v2318
    %2446 = vmatpush1.bf16.msra.mxu0 %v2317
    %2447 = vmatprep.subr.bf16.mxu0 %v2320
    %2448 = vmatpush1.bf16.msra.mxu0 %v2319
    %2449 = vmatprep.subr.bf16.mxu0 %v2322
    %2450 = vmatpush1.bf16.msra.mxu0 %v2321
    %2451 = vmatprep.subr.bf16.mxu0 %v2324
    %2452 = vmatpush1.bf16.msra.mxu0 %v2323
    %2453 = vmatprep.subr.bf16.mxu0 %v2326
    %2454 = vmatpush1.bf16.msra.mxu0 %v2325
    %2455 = vmatprep.subr.bf16.mxu0 %v2328
    %2456 = vmatpush1.bf16.msra.mxu0 %v2327
    %2457 = vmatprep.mubr.bf16.mxu0 %v2026
    %2458 = vmatmul.mubr.bf16.gmra.mrb[0].mxu0 %v2025
    %v2459 = vpop.f32.mrb[0].mxu0
    %v2460 = vadd.f32 %v2098, %v2459
    %v2461 = vpop.f32.mrb[0].mxu0
    %v2462 = vadd.f32 %v2102, %v2461
    %v2463 = vpop.f32.mrb[0].mxu0
    %v2464 = vpop.f32.mrb[0].mxu0
    %2465 = vdwg.mxu0
    %2466 = vmatprep.subr.bf16.mxu0 %v2330
    %2467 = vmatpush1.bf16.msra.mxu0 %v2329
    %2468 = vmatprep.subr.bf16.mxu0 %v2332
    %2469 = vmatpush1.bf16.msra.mxu0 %v2331
    %2470 = vmatprep.subr.bf16.mxu0 %v2334
    %2471 = vmatpush1.bf16.msra.mxu0 %v2333
    %2472 = vmatprep.subr.bf16.mxu0 %v2336
    %2473 = vmatpush1.bf16.msra.mxu0 %v2335
    %2474 = vmatprep.subr.bf16.mxu0 %v2338
    %2475 = vmatpush1.bf16.msra.mxu0 %v2337
    %2476 = vmatprep.subr.bf16.mxu0 %v2340
    %2477 = vmatpush1.bf16.msra.mxu0 %v2339
    %2478 = vmatprep.subr.bf16.mxu0 %v2342
    %2479 = vmatpush1.bf16.msra.mxu0 %v2341
    %2480 = vmatprep.subr.bf16.mxu0 %v2344
    %2481 = vmatpush1.bf16.msra.mxu0 %v2343
    %2482 = vmatprep.subr.bf16.mxu0 %v2346
    %2483 = vmatpush1.bf16.msra.mxu0 %v2345
    %2484 = vmatprep.subr.bf16.mxu0 %v2348
    %2485 = vmatpush1.bf16.msra.mxu0 %v2347
    %2486 = vmatprep.subr.bf16.mxu0 %v2350
    %2487 = vmatpush1.bf16.msra.mxu0 %v2349
    %2488 = vmatprep.subr.bf16.mxu0 %v2352
    %2489 = vmatpush1.bf16.msra.mxu0 %v2351
    %2490 = vmatprep.subr.bf16.mxu0 %v2354
    %2491 = vmatpush1.bf16.msra.mxu0 %v2353
    %2492 = vmatprep.subr.bf16.mxu0 %v2356
    %2493 = vmatpush1.bf16.msra.mxu0 %v2355
    %2494 = vmatprep.subr.bf16.mxu0 %v2358
    %2495 = vmatpush1.bf16.msra.mxu0 %v2357
    %2496 = vmatprep.subr.bf16.mxu0 %v2360
    %2497 = vmatpush1.bf16.msra.mxu0 %v2359
    %2498 = vmatprep.mubr.bf16.mxu0 %v2028
    %2499 = vmatmul.mubr.bf16.gmra.mrb[0].mxu0 %v2027
    %v2500 = vpop.f32.mrb[0].mxu0
    %v2501 = vadd.f32 %v2460, %v2500
    %v2502 = vpop.f32.mrb[0].mxu0
    %v2503 = vadd.f32 %v2462, %v2502
    %v2504 = vpop.f32.mrb[0].mxu0
    %v2505 = vpop.f32.mrb[0].mxu0
    %2506 = vdwg.mxu0
    %v2507 = vmax.f32 %v2501, 0.0
    %v2508 = vmax.f32 %v2503, 0.0
    %v2509 = vpack.c.bf16 %v2507, %v2507
    %v2510 = vpack.c.bf16 %v2508, %v2508
    %v2511 = vld [vmem:[#allocation8] sm:$0xf]
    %v2512 = vld [vmem:[#allocation8 + $0x4] sm:$0xf]
    %v2513 = vld [vmem:[#allocation8 + $0x8] sm:$0xf]
    %v2514 = vld [vmem:[#allocation8 + $0xc] sm:$0xf]
    %v2515 = vld [vmem:[#allocation8 + $0x10] sm:$0xf]
    %v2516 = vld [vmem:[#allocation8 + $0x14] sm:$0xf]
    %v2517 = vld [vmem:[#allocation8 + $0x18] sm:$0xf]
    %v2518 = vld [vmem:[#allocation8 + $0x1c] sm:$0xf]
    %v2519 = vld [vmem:[#allocation8 + $0x20] sm:$0xf]
    %v2520 = vld [vmem:[#allocation8 + $0x24] sm:$0xf]
    %v2521 = vld [vmem:[#allocation8 + $0x28] sm:$0xf]
    %v2522 = vld [vmem:[#allocation8 + $0x2c] sm:$0xf]
    %v2523 = vld [vmem:[#allocation8 + $0x30] sm:$0xf]
    %v2524 = vld [vmem:[#allocation8 + $0x34] sm:$0xf]
    %v2525 = vld [vmem:[#allocation8 + $0x38] sm:$0xf]
    %v2526 = vld [vmem:[#allocation8 + $0x3c] sm:$0xf]
    %v2527 = vld [vmem:[#allocation8 + $0x40] sm:$0xf]
    %v2528 = vld [vmem:[#allocation8 + $0x44] sm:$0xf]
    %v2529 = vld [vmem:[#allocation8 + $0x48] sm:$0xf]
    %v2530 = vld [vmem:[#allocation8 + $0x4c] sm:$0xf]
    %v2531 = vld [vmem:[#allocation8 + $0x50] sm:$0xf]
    %v2532 = vld [vmem:[#allocation8 + $0x54] sm:$0xf]
    %v2533 = vld [vmem:[#allocation8 + $0x58] sm:$0xf]
    %v2534 = vld [vmem:[#allocation8 + $0x5c] sm:$0xf]
    %v2535 = vld [vmem:[#allocation8 + $0x60] sm:$0xf]
    %v2536 = vld [vmem:[#allocation8 + $0x64] sm:$0xf]
    %v2537 = vld [vmem:[#allocation8 + $0x68] sm:$0xf]
    %v2538 = vld [vmem:[#allocation8 + $0x6c] sm:$0xf]
    %v2539 = vld [vmem:[#allocation8 + $0x70] sm:$0xf]
    %v2540 = vld [vmem:[#allocation8 + $0x74] sm:$0xf]
    %v2541 = vld [vmem:[#allocation8 + $0x78] sm:$0xf]
    %v2542 = vld [vmem:[#allocation8 + $0x7c] sm:$0xf]
    %v2543 = vld [vmem:[%s6] sm:$0x1]
    %v2545 = vlaneseq
    %v2546 = vshrl.u32 %v2545, 7
    %v2547 = vsub.s32 0, %v2546
    %v2548 = vrot.slane %v2543, %v2547
    %v2582 = vunpack.c.l.b16 %v2511
    %v2583 = vunpack.c.l.b16 %v2512
    %v2584 = vunpack.c.l.b16 %v2513
    %v2585 = vunpack.c.l.b16 %v2514
    %v2586 = vunpack.c.l.b16 %v2515
    %v2587 = vunpack.c.l.b16 %v2516
    %v2588 = vunpack.c.l.b16 %v2517
    %v2589 = vunpack.c.l.b16 %v2518
    %v2590 = vunpack.c.l.b16 %v2519
    %v2591 = vunpack.c.l.b16 %v2520
    %v2592 = vunpack.c.l.b16 %v2521
    %v2593 = vunpack.c.l.b16 %v2522
    %v2594 = vunpack.c.l.b16 %v2523
    %v2595 = vunpack.c.l.b16 %v2524
    %v2596 = vunpack.c.l.b16 %v2525
    %v2597 = vunpack.c.l.b16 %v2526
    %v2598 = vunpack.c.l.b16 %v2527
    %v2599 = vunpack.c.l.b16 %v2528
    %v2600 = vunpack.c.l.b16 %v2529
    %v2601 = vunpack.c.l.b16 %v2530
    %v2602 = vunpack.c.l.b16 %v2531
    %v2603 = vunpack.c.l.b16 %v2532
    %v2604 = vunpack.c.l.b16 %v2533
    %v2605 = vunpack.c.l.b16 %v2534
    %v2606 = vunpack.c.l.b16 %v2535
    %v2607 = vunpack.c.l.b16 %v2536
    %v2608 = vunpack.c.l.b16 %v2537
    %v2609 = vunpack.c.l.b16 %v2538
    %v2610 = vunpack.c.l.b16 %v2539
    %v2611 = vunpack.c.l.b16 %v2540
    %v2612 = vunpack.c.l.b16 %v2541
    %v2613 = vunpack.c.l.b16 %v2542
    %v2614 = vpack.c.b16 %v2583, %v2582
    %v2615 = vpack.c.b16 %v2585, %v2584
    %v2616 = vpack.c.b16 %v2587, %v2586
    %v2617 = vpack.c.b16 %v2589, %v2588
    %v2618 = vpack.c.b16 %v2591, %v2590
    %v2619 = vpack.c.b16 %v2593, %v2592
    %v2620 = vpack.c.b16 %v2595, %v2594
    %v2621 = vpack.c.b16 %v2597, %v2596
    %v2622 = vpack.c.b16 %v2599, %v2598
    %v2623 = vpack.c.b16 %v2601, %v2600
    %v2624 = vpack.c.b16 %v2603, %v2602
    %v2625 = vpack.c.b16 %v2605, %v2604
    %v2626 = vpack.c.b16 %v2607, %v2606
    %v2627 = vpack.c.b16 %v2609, %v2608
    %v2628 = vpack.c.b16 %v2611, %v2610
    %v2629 = vpack.c.b16 %v2613, %v2612
    %2646 = vmatprep.subr.bf16.mxu0 0
    %2647 = vmatpush1.bf16.msra.mxu0 %v2614
    %2648 = vmatprep.subr.bf16.mxu0 0
    %2649 = vmatpush1.bf16.msra.mxu0 %v2615
    %2650 = vmatprep.subr.bf16.mxu0 0
    %2651 = vmatpush1.bf16.msra.mxu0 %v2616
    %2652 = vmatprep.subr.bf16.mxu0 0
    %2653 = vmatpush1.bf16.msra.mxu0 %v2617
    %2654 = vmatprep.subr.bf16.mxu0 0
    %2655 = vmatpush1.bf16.msra.mxu0 %v2618
    %2656 = vmatprep.subr.bf16.mxu0 0
    %2657 = vmatpush1.bf16.msra.mxu0 %v2619
    %2658 = vmatprep.subr.bf16.mxu0 0
    %2659 = vmatpush1.bf16.msra.mxu0 %v2620
    %2660 = vmatprep.subr.bf16.mxu0 0
    %2661 = vmatpush1.bf16.msra.mxu0 %v2621
    %2662 = vmatprep.subr.bf16.mxu0 0
    %2663 = vmatpush1.bf16.msra.mxu0 %v2622
    %2664 = vmatprep.subr.bf16.mxu0 0
    %2665 = vmatpush1.bf16.msra.mxu0 %v2623
    %2666 = vmatprep.subr.bf16.mxu0 0
    %2667 = vmatpush1.bf16.msra.mxu0 %v2624
    %2668 = vmatprep.subr.bf16.mxu0 0
    %2669 = vmatpush1.bf16.msra.mxu0 %v2625
    %2670 = vmatprep.subr.bf16.mxu0 0
    %2671 = vmatpush1.bf16.msra.mxu0 %v2626
    %2672 = vmatprep.subr.bf16.mxu0 0
    %2673 = vmatpush1.bf16.msra.mxu0 %v2627
    %2674 = vmatprep.subr.bf16.mxu0 0
    %2675 = vmatpush1.bf16.msra.mxu0 %v2628
    %2676 = vmatprep.subr.bf16.mxu0 0
    %2677 = vmatpush1.bf16.msra.mxu0 %v2629
    %2678 = vmatprep.mubr.bf16.mxu0 %v2510
    %2679 = vmatmul.mubr.bf16.gmra.mrb[0].mxu0 %v2509
    %v2680 = vpop.f32.mrb[0].mxu0
    %v2681 = vadd.f32 %v2548, %v2680
    %v2682 = vpop.f32.mrb[0].mxu0
    %v2683 = vpop.f32.mrb[0].mxu0
    %v2684 = vpop.f32.mrb[0].mxu0
    %2685 = vdwg.mxu0
    %v2686 = vtanh.pop %v2681
    %2687 = vst [vmem:[#allocation10] sm:$0x3] %v2686
    // Predicated region
    $region46: #{tpu_custom_call.1} parent=1 // pred_check
      _
    $region47: #{tpu_custom_call.1} parent=1 // pred_check_branch
      %2689 = sbr.rel (0) target = $region49
    $region48: #{tpu_custom_call.1} parent=1 // pred_region
      %s2691 = ssub.s32 32, 32
      %2692 = vsyncadd [#allocation4], %s2691
      %s2694 = sshll.u32 [#allocation10], 4
      %s2695 = int_to_ptr.vmem [resolvable:$true] %s2694
      %2697 = dma.vmem_to_hbm [thread:$0]  %s2695, 32, %s7, [#allocation4]
    $region49: #{tpu_custom_call.1} parent=1 // pred_fallthru
      _
    // Predicated region
    $region50: #{tpu_custom_call.1} parent=1 // pred_check
      _
    $region51: #{tpu_custom_call.1} parent=1 // pred_check_branch
      %2699 = sbr.rel (0) target = $region53
    $region52: #{tpu_custom_call.1} parent=1 // pred_region
      %2700 = dma.done [#allocation4], 32
    $region53: #{tpu_custom_call.1} parent=1 // pred_fallthru
      _
    %2701 = vsyncpa [#allocation3], 1
    %2702 = vsyncpa [#allocation6], 1
    %2703 = vsyncpa [#allocation9], 1
    %2704 = vsyncpa [#allocation4], 1

</llo_original>
